<compile_context>
chip_gen: v7x
topology: tpu7x:2x2x1
jax: 0.10.0
libtpu: 0.0.40
codegen_flags: <defaults>
</compile_context>

<pallas_src>
import math

import jax
import jax.numpy as jnp
import numpy as np
from jax.experimental import pallas as pl
from jax.experimental.pallas import tpu as pltpu

# --- small hyperparameters (original uses d_model=512, d_ff=2048, etc.) ---
B, S = 2, 8
D_MODEL = 32
N_HEADS = 4
D_K = 16
D_V = 16
D_FF = 64
EPS = 1e-5                 # torch.nn.LayerNorm default

T = B * S                  # total tokens
HD = N_HEADS * D_K         # fused per-projection width


def _layernorm(x, gamma, beta):
    mean = jnp.mean(x, axis=-1, keepdims=True)
    var = jnp.mean((x - mean) ** 2, axis=-1, keepdims=True)
    return (x - mean) * jax.lax.rsqrt(var + EPS) * gamma + beta


def encoder_layer_kernel(len_ref,                      # scalar prefetch (SMEM)
                         x_ref, wqkv_ref, bqkv_ref, wo_ref,
                         w1_ref, b1_ref, w2_ref, vecs_ref,
                         out_ref, attn_ref):
    b = pl.program_id(0)
    x = x_ref[...]                                     # (S, D_MODEL) f32
    x_bf = x.astype(jnp.bfloat16)

    # --- fused Q/K/V projection: one lane-dense matmul (scale folded in Wq)
    qkv = jnp.dot(x_bf, wqkv_ref[...],
                  preferred_element_type=jnp.float32) + bqkv_ref[...]  # (S, 3*HD)

    # --- head split (layout only: static lane slices + leading-dim stack)
    def split_heads(base, d):
        return jnp.stack(
            [qkv[:, base + h * d: base + (h + 1) * d] for h in range(N_HEADS)],
            axis=0)                                    # (H, S, d)

    q = split_heads(0, D_K).astype(jnp.bfloat16)
    k = split_heads(HD, D_K).astype(jnp.bfloat16)
    v = split_heads(2 * HD, D_V).astype(jnp.bfloat16)

    # --- scaled dot-product attention, batched over heads
    scores = jnp.einsum("hqd,hkd->hqk", q, k,
                        preferred_element_type=jnp.float32)    # (H, S, S) f32

    # additive pad mask built in-kernel from this batch element's length
    length = len_ref[b]
    col = jax.lax.broadcasted_iota(jnp.int32, (S, S), 1)
    neg = jnp.where(col >= length, -1000000000.0, 0.0).astype(jnp.float32)
    scores = scores + neg[None]

    m = jnp.max(scores, axis=-1, keepdims=True)
    e = jnp.exp(scores - m)
    denom = jnp.sum(e, axis=-1, keepdims=True)
    attn = e * pl.reciprocal(denom, approx=True)               # softmax, f32
    attn_ref[...] = attn[None]                                 # (1, H, S, S)

    ctx = jnp.einsum("hqk,hkd->hqd", attn.astype(jnp.bfloat16), v,
                     preferred_element_type=jnp.float32)       # (H, S, D_V) f32
    # concat heads along lanes -> single output-projection matmul
    ctx_cat = jnp.concatenate([ctx[h] for h in range(N_HEADS)], axis=-1)

    vecs = vecs_ref[...]                                       # (6, D_MODEL)
    bo, g1, be1 = vecs[0:1], vecs[1:2], vecs[2:3]
    b2, g2, be2 = vecs[3:4], vecs[4:5], vecs[5:6]

    mha = jnp.dot(ctx_cat.astype(jnp.bfloat16), wo_ref[...],
                  preferred_element_type=jnp.float32) + bo     # (S, D_MODEL)
    y = _layernorm(mha + x, g1, be1)

    # --- position-wise FFN (conv1d k=1 == linear) + residual + LayerNorm
    h1 = jnp.maximum(
        jnp.dot(y.astype(jnp.bfloat16), w1_ref[...],
                preferred_element_type=jnp.float32) + b1_ref[...], 0.0)
    h2 = jnp.dot(h1.astype(jnp.bfloat16), w2_ref[...],
                 preferred_element_type=jnp.float32) + b2
    out_ref[...] = _layernorm(h2 + y, g2, be2)


def pack_params(Wq, bq, Wk, bk, Wv, bv, Wo, bo, g1, be1, W1, b1, W2, b2, g2, be2):
    """Host-side one-off packing:
       * Wq/bq get 1/sqrt(d_k) folded in,
       * Q/K/V weights fused into one (D_MODEL, 3*H*D_K) matrix (bf16),
       * matmul weights cast to bf16 (MXU-native), small vectors stay f32."""
    scale = 1.0 / math.sqrt(D_K)
    wqkv = jnp.concatenate([Wq * scale, Wk, Wv], axis=1).astype(jnp.bfloat16)
    bqkv = jnp.concatenate([bq * scale, bk, bv], axis=1).astype(jnp.float32)
    vecs = jnp.concatenate([bo, g1, be1, b2, g2, be2], axis=0)   # (6, D_MODEL)
    return (wqkv, bqkv,
            Wo.astype(jnp.bfloat16),
            W1.astype(jnp.bfloat16), b1.astype(jnp.float32),
            W2.astype(jnp.bfloat16), vecs.astype(jnp.float32))


def encoder_layer(x, lengths, packed_params):
    """x: (B, S, D_MODEL) f32, lengths: (B,) int32 valid-token counts."""
    wqkv, bqkv, wo, w1, b1, w2, vecs = packed_params
    x2 = x.reshape(T, D_MODEL)

    def resident(shape):             # grid-invariant block (stays in VMEM)
        n = len(shape)
        return pl.BlockSpec(shape, lambda b, lens, _n=n: (0,) * _n)

    in_specs = [
        pl.BlockSpec((S, D_MODEL), lambda b, lens: (b, 0)),      # x tokens
        resident(wqkv.shape),
        resident(bqkv.shape),
        resident(wo.shape),
        resident(w1.shape),
        resident(b1.shape),
        resident(w2.shape),
        resident(vecs.shape),
    ]
    out_specs = [
        pl.BlockSpec((S, D_MODEL), lambda b, lens: (b, 0)),
        pl.BlockSpec((1, N_HEADS, S, S), lambda b, lens: (b, 0, 0, 0)),
    ]
    out_shape = [
        jax.ShapeDtypeStruct((T, D_MODEL), jnp.float32),
        jax.ShapeDtypeStruct((B, N_HEADS, S, S), jnp.float32),
    ]

    out, attn = pl.pallas_call(
        encoder_layer_kernel,
        out_shape=out_shape,
        grid_spec=pltpu.PrefetchScalarGridSpec(
            num_scalar_prefetch=1,            # lengths -> SMEM
            grid=(B,),                        # one batch element per step
            in_specs=in_specs,
            out_specs=out_specs,
        ),
        compiler_params=pltpu.CompilerParams(
            dimension_semantics=("parallel",)),   # both TCs on v7x
    )(lengths, x2, wqkv, bqkv, wo, w1, b1, w2, vecs)

    return out.reshape(B, S, D_MODEL), attn


def ref_forward(x, mask, params):
    """Pure-JAX f32 reference mirroring the PyTorch module semantics."""
    (Wq, bq, Wk, bk, Wv, bv, Wo, bo, g1, be1, W1, b1, W2, b2, g2, be2) = params
    q = (x @ Wq + bq).reshape(B, S, N_HEADS, D_K).transpose(0, 2, 1, 3)
    k = (x @ Wk + bk).reshape(B, S, N_HEADS, D_K).transpose(0, 2, 1, 3)
    v = (x @ Wv + bv).reshape(B, S, N_HEADS, D_V).transpose(0, 2, 1, 3)
    scores = jnp.einsum("bhqd,bhkd->bhqk", q, k) / math.sqrt(D_K)
    scores = jnp.where(mask[:, None, :, :] > 0.5, -1000000000.0, scores)
    attn = jax.nn.softmax(scores, axis=-1)
    ctx = jnp.einsum("bhqk,bhkd->bhqd", attn, v)
    ctx = ctx.transpose(0, 2, 1, 3).reshape(B, S, N_HEADS * D_V)
    y = _layernorm(ctx @ Wo + bo + x, g1, be1)
    h1 = jnp.maximum(y @ W1 + b1, 0.0)
    h2 = h1 @ W2 + b2
    out = _layernorm(h2 + y, g2, be2)
    return out, attn


if __name__ == "__main__":
    key = jax.random.PRNGKey(0)
    ks = jax.random.split(key, 14)

    def init(k, shape, scale):
        return jax.random.normal(k, shape, jnp.float32) * scale

    Wq = init(ks[0], (D_MODEL, N_HEADS * D_K), 1.0 / math.sqrt(D_MODEL))
    bq = init(ks[1], (1, N_HEADS * D_K), 0.02)
    Wk = init(ks[2], (D_MODEL, N_HEADS * D_K), 1.0 / math.sqrt(D_MODEL))
    bk = init(ks[3], (1, N_HEADS * D_K), 0.02)
    Wv = init(ks[4], (D_MODEL, N_HEADS * D_V), 1.0 / math.sqrt(D_MODEL))
    bv = init(ks[5], (1, N_HEADS * D_V), 0.02)
    Wo = init(ks[6], (N_HEADS * D_V, D_MODEL), 1.0 / math.sqrt(N_HEADS * D_V))
    bo = init(ks[7], (1, D_MODEL), 0.02)
    g1 = jnp.ones((1, D_MODEL), jnp.float32)
    be1 = jnp.zeros((1, D_MODEL), jnp.float32)
    W1 = init(ks[8], (D_MODEL, D_FF), 1.0 / math.sqrt(D_MODEL))   # conv1 (k=1)
    b1 = init(ks[9], (1, D_FF), 0.02)
    W2 = init(ks[10], (D_FF, D_MODEL), 1.0 / math.sqrt(D_FF))     # conv2 (k=1)
    b2 = init(ks[11], (1, D_MODEL), 0.02)
    g2 = jnp.ones((1, D_MODEL), jnp.float32)
    be2 = jnp.zeros((1, D_MODEL), jnp.float32)

    raw_params = (Wq, bq, Wk, bk, Wv, bv, Wo, bo, g1, be1,
                  W1, b1, W2, b2, g2, be2)
    packed = pack_params(*raw_params)

    enc_inputs = init(ks[12], (B, S, D_MODEL), 1.0)

    # pad-style self-attention mask: batch 0 has 8 valid tokens, batch 1 has 6
    lengths = jnp.array([8, 6], jnp.int32)
    col = jnp.arange(S)[None, None, :]                       # (1,1,S)
    enc_self_attn_mask = (col >= lengths[:, None, None]).astype(jnp.float32)
    enc_self_attn_mask = jnp.broadcast_to(enc_self_attn_mask, (B, S, S))

    enc_out, attn = encoder_layer(enc_inputs, lengths, packed)
    enc_out = jax.block_until_ready(enc_out)
    attn = jax.block_until_ready(attn)

    ref_out, ref_attn = ref_forward(enc_inputs, enc_self_attn_mask, raw_params)
    # bf16 MXU operands in the kernel vs f32 reference -> loosened tolerances
    np.testing.assert_allclose(np.asarray(enc_out), np.asarray(ref_out),
                               atol=4e-2, rtol=4e-2)
    np.testing.assert_allclose(np.asarray(attn), np.asarray(ref_attn),
                               atol=2e-2, rtol=2e-2)

    print("KERNEL_OK")
</pallas_src>

<mosaic_0001>
module attributes {stable_mosaic.version = 11 : i64} {
  func.func @encoder_layer_kernel(%arg0: i32, %arg1: memref<2xi32, #tpu.memory_space<smem>>, %arg2: memref<8x32xf32, #tpu.memory_space<vmem>>, %arg3: memref<32x192xbf16, #tpu.memory_space<vmem>>, %arg4: memref<1x192xf32, #tpu.memory_space<vmem>>, %arg5: memref<64x32xbf16, #tpu.memory_space<vmem>>, %arg6: memref<32x64xbf16, #tpu.memory_space<vmem>>, %arg7: memref<1x64xf32, #tpu.memory_space<vmem>>, %arg8: memref<64x32xbf16, #tpu.memory_space<vmem>>, %arg9: memref<6x32xf32, #tpu.memory_space<vmem>>, %arg10: memref<8x32xf32, #tpu.memory_space<vmem>>, %arg11: memref<1x4x8x8xf32, #tpu.memory_space<vmem>>) attributes {dimension_semantics = [#tpu.dimension_semantics<parallel>], iteration_bounds = array<i64: 2>, scalar_prefetch = 1 : i64, scratch_operands = 0 : i64, tpu.core_type = #tpu.core_type<tc>, window_params = [{transform_indices = @transform_0, window_bounds = array<i64: 8, 32>}, {pipeline_mode = #tpu.pipeline_mode<synchronous>, transform_indices = @transform_1, window_bounds = array<i64: 32, 192>}, {pipeline_mode = #tpu.pipeline_mode<synchronous>, transform_indices = @transform_2, window_bounds = array<i64: 1, 192>}, {pipeline_mode = #tpu.pipeline_mode<synchronous>, transform_indices = @transform_3, window_bounds = array<i64: 64, 32>}, {pipeline_mode = #tpu.pipeline_mode<synchronous>, transform_indices = @transform_4, window_bounds = array<i64: 32, 64>}, {pipeline_mode = #tpu.pipeline_mode<synchronous>, transform_indices = @transform_5, window_bounds = array<i64: 1, 64>}, {pipeline_mode = #tpu.pipeline_mode<synchronous>, transform_indices = @transform_6, window_bounds = array<i64: 64, 32>}, {pipeline_mode = #tpu.pipeline_mode<synchronous>, transform_indices = @transform_7, window_bounds = array<i64: 6, 32>}, {transform_indices = @transform_8, window_bounds = array<i64: 8, 32>}, {transform_indices = @transform_9, window_bounds = array<i64: 1, 4, 8, 8>}]} {
    %c0 = arith.constant 0 : index
    %c0_0 = arith.constant 0 : index
    %0 = vector.load %arg2[%c0, %c0_0] : memref<8x32xf32, #tpu.memory_space<vmem>>, vector<8x32xf32>
    %1 = arith.truncf %0 : vector<8x32xf32> to vector<8x32xbf16>
    %c0_1 = arith.constant 0 : index
    %c0_2 = arith.constant 0 : index
    %2 = vector.load %arg3[%c0_1, %c0_2] : memref<32x192xbf16, #tpu.memory_space<vmem>>, vector<32x192xbf16>
    %cst = arith.constant dense<0.000000e+00> : vector<8x192xf32>
    %3 = tpu.matmul %1, %2, %cst {dimension_numbers = #tpu.dot_dimension_numbers<[1], [0], [0], [1], [0, 0, 1, 1], [], []>} : vector<8x32xbf16>, vector<32x192xbf16>, vector<8x192xf32> -> vector<8x192xf32>
    %c0_3 = arith.constant 0 : index
    %c0_4 = arith.constant 0 : index
    %4 = vector.load %arg4[%c0_3, %c0_4] : memref<1x192xf32, #tpu.memory_space<vmem>>, vector<1x192xf32>
    %5 = vector.broadcast %4 : vector<1x192xf32> to vector<8x192xf32>
    %6 = arith.addf %3, %5 : vector<8x192xf32>
    %7 = vector.extract_strided_slice %6 {offsets = [0, 0], sizes = [8, 16], strides = [1, 1]} : vector<8x192xf32> to vector<8x16xf32>
    %8 = vector.extract_strided_slice %6 {offsets = [0, 16], sizes = [8, 16], strides = [1, 1]} : vector<8x192xf32> to vector<8x16xf32>
    %9 = vector.extract_strided_slice %6 {offsets = [0, 32], sizes = [8, 16], strides = [1, 1]} : vector<8x192xf32> to vector<8x16xf32>
    %10 = vector.extract_strided_slice %6 {offsets = [0, 48], sizes = [8, 16], strides = [1, 1]} : vector<8x192xf32> to vector<8x16xf32>
    %11 = vector.shape_cast %7 : vector<8x16xf32> to vector<1x8x16xf32>
    %12 = vector.shape_cast %8 : vector<8x16xf32> to vector<1x8x16xf32>
    %13 = vector.shape_cast %9 : vector<8x16xf32> to vector<1x8x16xf32>
    %14 = vector.shape_cast %10 : vector<8x16xf32> to vector<1x8x16xf32>
    %15 = tpu.concatenate %11, %12, %13, %14 in 0 : vector<1x8x16xf32>, vector<1x8x16xf32>, vector<1x8x16xf32>, vector<1x8x16xf32> -> vector<4x8x16xf32>
    %16 = arith.truncf %15 : vector<4x8x16xf32> to vector<4x8x16xbf16>
    %17 = vector.extract_strided_slice %6 {offsets = [0, 64], sizes = [8, 16], strides = [1, 1]} : vector<8x192xf32> to vector<8x16xf32>
    %18 = vector.extract_strided_slice %6 {offsets = [0, 80], sizes = [8, 16], strides = [1, 1]} : vector<8x192xf32> to vector<8x16xf32>
    %19 = vector.extract_strided_slice %6 {offsets = [0, 96], sizes = [8, 16], strides = [1, 1]} : vector<8x192xf32> to vector<8x16xf32>
    %20 = vector.extract_strided_slice %6 {offsets = [0, 112], sizes = [8, 16], strides = [1, 1]} : vector<8x192xf32> to vector<8x16xf32>
    %21 = vector.shape_cast %17 : vector<8x16xf32> to vector<1x8x16xf32>
    %22 = vector.shape_cast %18 : vector<8x16xf32> to vector<1x8x16xf32>
    %23 = vector.shape_cast %19 : vector<8x16xf32> to vector<1x8x16xf32>
    %24 = vector.shape_cast %20 : vector<8x16xf32> to vector<1x8x16xf32>
    %25 = tpu.concatenate %21, %22, %23, %24 in 0 : vector<1x8x16xf32>, vector<1x8x16xf32>, vector<1x8x16xf32>, vector<1x8x16xf32> -> vector<4x8x16xf32>
    %26 = arith.truncf %25 : vector<4x8x16xf32> to vector<4x8x16xbf16>
    %27 = vector.extract_strided_slice %6 {offsets = [0, 128], sizes = [8, 16], strides = [1, 1]} : vector<8x192xf32> to vector<8x16xf32>
    %28 = vector.extract_strided_slice %6 {offsets = [0, 144], sizes = [8, 16], strides = [1, 1]} : vector<8x192xf32> to vector<8x16xf32>
    %29 = vector.extract_strided_slice %6 {offsets = [0, 160], sizes = [8, 16], strides = [1, 1]} : vector<8x192xf32> to vector<8x16xf32>
    %30 = vector.extract_strided_slice %6 {offsets = [0, 176], sizes = [8, 16], strides = [1, 1]} : vector<8x192xf32> to vector<8x16xf32>
    %31 = vector.shape_cast %27 : vector<8x16xf32> to vector<1x8x16xf32>
    %32 = vector.shape_cast %28 : vector<8x16xf32> to vector<1x8x16xf32>
    %33 = vector.shape_cast %29 : vector<8x16xf32> to vector<1x8x16xf32>
    %34 = vector.shape_cast %30 : vector<8x16xf32> to vector<1x8x16xf32>
    %35 = tpu.concatenate %31, %32, %33, %34 in 0 : vector<1x8x16xf32>, vector<1x8x16xf32>, vector<1x8x16xf32>, vector<1x8x16xf32> -> vector<4x8x16xf32>
    %36 = arith.truncf %35 : vector<4x8x16xf32> to vector<4x8x16xbf16>
    "tpu.trace_start"() <{level = 10 : i32, message = "hqd,hkd->hqk"}> : () -> ()
    %cst_5 = arith.constant dense<0.000000e+00> : vector<4x8x8xf32>
    %37 = tpu.matmul %16, %26, %cst_5 {dimension_numbers = #tpu.dot_dimension_numbers<[2], [2], [1], [1], [0, 0, 0, 1, 1, 1], [0], [0]>} : vector<4x8x16xbf16>, vector<4x8x16xbf16>, vector<4x8x8xf32> -> vector<4x8x8xf32>
    "tpu.trace_stop"() : () -> ()
    %38 = arith.index_cast %arg0 : i32 to index
    %39 = memref.load %arg1[%38] : memref<2xi32, #tpu.memory_space<smem>>
    %40 = tpu.iota {dimensions = array<i32: 1>} : vector<8x8xi32>
    %41 = vector.broadcast %39 : i32 to vector<8x8xi32>
    %42 = arith.cmpi sge, %40, %41 : vector<8x8xi32>
    %cst_6 = arith.constant -1.000000e+09 : f32
    %cst_7 = arith.constant 0.000000e+00 : f32
    %43 = vector.broadcast %cst_6 : f32 to vector<8x8xf32>
    %44 = vector.broadcast %cst_7 : f32 to vector<8x8xf32>
    %45 = arith.select %42, %43, %44 : vector<8x8xi1>, vector<8x8xf32>
    %46 = vector.shape_cast %45 : vector<8x8xf32> to vector<1x8x8xf32>
    %47 = vector.broadcast %46 : vector<1x8x8xf32> to vector<4x8x8xf32>
    %48 = arith.addf %37, %47 : vector<4x8x8xf32>
    %cst_8 = arith.constant dense<0xFF800000> : vector<4x8xf32>
    %49 = vector.multi_reduction <maximumf>, %48, %cst_8 [2] : vector<4x8x8xf32> to vector<4x8xf32>
    %50 = vector.shape_cast %49 : vector<4x8xf32> to vector<4x8x1xf32>
    %51 = vector.broadcast %50 : vector<4x8x1xf32> to vector<4x8x8xf32>
    %52 = arith.subf %48, %51 : vector<4x8x8xf32>
    %53 = math.exp %52 : vector<4x8x8xf32>
    %cst_9 = arith.constant dense<0.000000e+00> : vector<4x8xf32>
    %54 = vector.multi_reduction <add>, %53, %cst_9 [2] : vector<4x8x8xf32> to vector<4x8xf32>
    %55 = vector.shape_cast %54 : vector<4x8xf32> to vector<4x8x1xf32>
    %56 = tpu.reciprocal %55 {approx = true} : vector<4x8x1xf32> -> vector<4x8x1xf32>
    %57 = vector.broadcast %56 : vector<4x8x1xf32> to vector<4x8x8xf32>
    %58 = arith.mulf %53, %57 : vector<4x8x8xf32>
    %59 = vector.shape_cast %58 : vector<4x8x8xf32> to vector<1x4x8x8xf32>
    %c0_10 = arith.constant 0 : index
    %c0_11 = arith.constant 0 : index
    %c0_12 = arith.constant 0 : index
    %c0_13 = arith.constant 0 : index
    %60 = vector.load %arg11[%c0_10, %c0_11, %c0_12, %c0_13] : memref<1x4x8x8xf32, #tpu.memory_space<vmem>>, vector<1x4x8x8xf32>
    tpu.vector_store %arg11[%c0_10, %c0_11, %c0_12, %c0_13], %59 {strides = array<i32>} : memref<1x4x8x8xf32, #tpu.memory_space<vmem>>, vector<1x4x8x8xf32>,
    %61 = arith.truncf %58 : vector<4x8x8xf32> to vector<4x8x8xbf16>
    "tpu.trace_start"() <{level = 10 : i32, message = "hqk,hkd->hqd"}> : () -> ()
    %cst_14 = arith.constant dense<0.000000e+00> : vector<4x8x16xf32>
    %62 = tpu.matmul %61, %36, %cst_14 {dimension_numbers = #tpu.dot_dimension_numbers<[2], [1], [1], [2], [0, 0, 0, 1, 1, 2], [0], [0]>} : vector<4x8x8xbf16>, vector<4x8x16xbf16>, vector<4x8x16xf32> -> vector<4x8x16xf32>
    "tpu.trace_stop"() : () -> ()
    %63 = vector.extract_strided_slice %62 {offsets = [0, 0, 0], sizes = [1, 8, 16], strides = [1, 1, 1]} : vector<4x8x16xf32> to vector<1x8x16xf32>
    %64 = vector.shape_cast %63 : vector<1x8x16xf32> to vector<8x16xf32>
    %65 = vector.extract_strided_slice %62 {offsets = [1, 0, 0], sizes = [1, 8, 16], strides = [1, 1, 1]} : vector<4x8x16xf32> to vector<1x8x16xf32>
    %66 = vector.shape_cast %65 : vector<1x8x16xf32> to vector<8x16xf32>
    %67 = vector.extract_strided_slice %62 {offsets = [2, 0, 0], sizes = [1, 8, 16], strides = [1, 1, 1]} : vector<4x8x16xf32> to vector<1x8x16xf32>
    %68 = vector.shape_cast %67 : vector<1x8x16xf32> to vector<8x16xf32>
    %69 = vector.extract_strided_slice %62 {offsets = [3, 0, 0], sizes = [1, 8, 16], strides = [1, 1, 1]} : vector<4x8x16xf32> to vector<1x8x16xf32>
    %70 = vector.shape_cast %69 : vector<1x8x16xf32> to vector<8x16xf32>
    %71 = tpu.concatenate %64, %66, %68, %70 in 1 : vector<8x16xf32>, vector<8x16xf32>, vector<8x16xf32>, vector<8x16xf32> -> vector<8x64xf32>
    %c0_15 = arith.constant 0 : index
    %c0_16 = arith.constant 0 : index
    %72 = vector.load %arg9[%c0_15, %c0_16] : memref<6x32xf32, #tpu.memory_space<vmem>>, vector<6x32xf32>
    %73 = vector.extract_strided_slice %72 {offsets = [0, 0], sizes = [1, 32], strides = [1, 1]} : vector<6x32xf32> to vector<1x32xf32>
    %74 = vector.extract_strided_slice %72 {offsets = [1, 0], sizes = [1, 32], strides = [1, 1]} : vector<6x32xf32> to vector<1x32xf32>
    %75 = vector.extract_strided_slice %72 {offsets = [2, 0], sizes = [1, 32], strides = [1, 1]} : vector<6x32xf32> to vector<1x32xf32>
    %76 = vector.extract_strided_slice %72 {offsets = [3, 0], sizes = [1, 32], strides = [1, 1]} : vector<6x32xf32> to vector<1x32xf32>
    %77 = vector.extract_strided_slice %72 {offsets = [4, 0], sizes = [1, 32], strides = [1, 1]} : vector<6x32xf32> to vector<1x32xf32>
    %78 = vector.extract_strided_slice %72 {offsets = [5, 0], sizes = [1, 32], strides = [1, 1]} : vector<6x32xf32> to vector<1x32xf32>
    %79 = arith.truncf %71 : vector<8x64xf32> to vector<8x64xbf16>
    %c0_17 = arith.constant 0 : index
    %c0_18 = arith.constant 0 : index
    %80 = vector.load %arg5[%c0_17, %c0_18] : memref<64x32xbf16, #tpu.memory_space<vmem>>, vector<64x32xbf16>
    %cst_19 = arith.constant dense<0.000000e+00> : vector<8x32xf32>
    %81 = tpu.matmul %79, %80, %cst_19 {dimension_numbers = #tpu.dot_dimension_numbers<[1], [0], [0], [1], [0, 0, 1, 1], [], []>} : vector<8x64xbf16>, vector<64x32xbf16>, vector<8x32xf32> -> vector<8x32xf32>
    %82 = vector.broadcast %73 : vector<1x32xf32> to vector<8x32xf32>
    %83 = arith.addf %81, %82 : vector<8x32xf32>
    %84 = arith.addf %83, %0 : vector<8x32xf32>
    %cst_20 = arith.constant dense<0.000000e+00> : vector<8xf32>
    %85 = vector.multi_reduction <add>, %84, %cst_20 [1] : vector<8x32xf32> to vector<8xf32>
    %86 = vector.shape_cast %85 : vector<8xf32> to vector<8x1xf32>
    %cst_21 = arith.constant 3.200000e+01 : f32
    %87 = vector.broadcast %cst_21 : f32 to vector<8x1xf32>
    %88 = arith.divf %86, %87 : vector<8x1xf32>
    %89 = vector.broadcast %88 : vector<8x1xf32> to vector<8x32xf32>
    %90 = arith.subf %84, %89 : vector<8x32xf32>
    %91 = arith.mulf %90, %90 : vector<8x32xf32>
    %cst_22 = arith.constant dense<0.000000e+00> : vector<8xf32>
    %92 = vector.multi_reduction <add>, %91, %cst_22 [1] : vector<8x32xf32> to vector<8xf32>
    %93 = vector.shape_cast %92 : vector<8xf32> to vector<8x1xf32>
    %cst_23 = arith.constant 3.200000e+01 : f32
    %94 = vector.broadcast %cst_23 : f32 to vector<8x1xf32>
    %95 = arith.divf %93, %94 : vector<8x1xf32>
    %96 = vector.broadcast %88 : vector<8x1xf32> to vector<8x32xf32>
    %97 = arith.subf %84, %96 : vector<8x32xf32>
    %cst_24 = arith.constant 9.99999974E-6 : f32
    %98 = vector.broadcast %cst_24 : f32 to vector<8x1xf32>
    %99 = arith.addf %95, %98 : vector<8x1xf32>
    %100 = math.rsqrt %99 : vector<8x1xf32>
    %101 = vector.broadcast %100 : vector<8x1xf32> to vector<8x32xf32>
    %102 = arith.mulf %97, %101 : vector<8x32xf32>
    %103 = vector.broadcast %74 : vector<1x32xf32> to vector<8x32xf32>
    %104 = arith.mulf %102, %103 : vector<8x32xf32>
    %105 = vector.broadcast %75 : vector<1x32xf32> to vector<8x32xf32>
    %106 = arith.addf %104, %105 : vector<8x32xf32>
    %107 = arith.truncf %106 : vector<8x32xf32> to vector<8x32xbf16>
    %c0_25 = arith.constant 0 : index
    %c0_26 = arith.constant 0 : index
    %108 = vector.load %arg6[%c0_25, %c0_26] : memref<32x64xbf16, #tpu.memory_space<vmem>>, vector<32x64xbf16>
    %cst_27 = arith.constant dense<0.000000e+00> : vector<8x64xf32>
    %109 = tpu.matmul %107, %108, %cst_27 {dimension_numbers = #tpu.dot_dimension_numbers<[1], [0], [0], [1], [0, 0, 1, 1], [], []>} : vector<8x32xbf16>, vector<32x64xbf16>, vector<8x64xf32> -> vector<8x64xf32>
    %c0_28 = arith.constant 0 : index
    %c0_29 = arith.constant 0 : index
    %110 = vector.load %arg7[%c0_28, %c0_29] : memref<1x64xf32, #tpu.memory_space<vmem>>, vector<1x64xf32>
    %111 = vector.broadcast %110 : vector<1x64xf32> to vector<8x64xf32>
    %112 = arith.addf %109, %111 : vector<8x64xf32>
    %cst_30 = arith.constant 0.000000e+00 : f32
    %113 = vector.broadcast %cst_30 : f32 to vector<8x64xf32>
    %114 = arith.maximumf %112, %113 : vector<8x64xf32>
    %115 = arith.truncf %114 : vector<8x64xf32> to vector<8x64xbf16>
    %c0_31 = arith.constant 0 : index
    %c0_32 = arith.constant 0 : index
    %116 = vector.load %arg8[%c0_31, %c0_32] : memref<64x32xbf16, #tpu.memory_space<vmem>>, vector<64x32xbf16>
    %cst_33 = arith.constant dense<0.000000e+00> : vector<8x32xf32>
    %117 = tpu.matmul %115, %116, %cst_33 {dimension_numbers = #tpu.dot_dimension_numbers<[1], [0], [0], [1], [0, 0, 1, 1], [], []>} : vector<8x64xbf16>, vector<64x32xbf16>, vector<8x32xf32> -> vector<8x32xf32>
    %118 = vector.broadcast %76 : vector<1x32xf32> to vector<8x32xf32>
    %119 = arith.addf %117, %118 : vector<8x32xf32>
    %120 = arith.addf %119, %106 : vector<8x32xf32>
    %cst_34 = arith.constant dense<0.000000e+00> : vector<8xf32>
    %121 = vector.multi_reduction <add>, %120, %cst_34 [1] : vector<8x32xf32> to vector<8xf32>
    %122 = vector.shape_cast %121 : vector<8xf32> to vector<8x1xf32>
    %cst_35 = arith.constant 3.200000e+01 : f32
    %123 = vector.broadcast %cst_35 : f32 to vector<8x1xf32>
    %124 = arith.divf %122, %123 : vector<8x1xf32>
    %125 = vector.broadcast %124 : vector<8x1xf32> to vector<8x32xf32>
    %126 = arith.subf %120, %125 : vector<8x32xf32>
    %127 = arith.mulf %126, %126 : vector<8x32xf32>
    %cst_36 = arith.constant dense<0.000000e+00> : vector<8xf32>
    %128 = vector.multi_reduction <add>, %127, %cst_36 [1] : vector<8x32xf32> to vector<8xf32>
    %129 = vector.shape_cast %128 : vector<8xf32> to vector<8x1xf32>
    %cst_37 = arith.constant 3.200000e+01 : f32
    %130 = vector.broadcast %cst_37 : f32 to vector<8x1xf32>
    %131 = arith.divf %129, %130 : vector<8x1xf32>
    %132 = vector.broadcast %124 : vector<8x1xf32> to vector<8x32xf32>
    %133 = arith.subf %120, %132 : vector<8x32xf32>
    %cst_38 = arith.constant 9.99999974E-6 : f32
    %134 = vector.broadcast %cst_38 : f32 to vector<8x1xf32>
    %135 = arith.addf %131, %134 : vector<8x1xf32>
    %136 = math.rsqrt %135 : vector<8x1xf32>
    %137 = vector.broadcast %136 : vector<8x1xf32> to vector<8x32xf32>
    %138 = arith.mulf %133, %137 : vector<8x32xf32>
    %139 = vector.broadcast %77 : vector<1x32xf32> to vector<8x32xf32>
    %140 = arith.mulf %138, %139 : vector<8x32xf32>
    %141 = vector.broadcast %78 : vector<1x32xf32> to vector<8x32xf32>
    %142 = arith.addf %140, %141 : vector<8x32xf32>
    %c0_39 = arith.constant 0 : index
    %c0_40 = arith.constant 0 : index
    %143 = vector.load %arg10[%c0_39, %c0_40] : memref<8x32xf32, #tpu.memory_space<vmem>>, vector<8x32xf32>
    tpu.vector_store %arg10[%c0_39, %c0_40], %142 {strides = array<i32>} : memref<8x32xf32, #tpu.memory_space<vmem>>, vector<8x32xf32>,
    return
  }
  func.func @transform_0(%arg0: i32, %arg1: memref<2xi32, #tpu.memory_space<smem>>) -> (i32, i32) {
    %c0_i32 = arith.constant 0 : i32
    %c0_i32_0 = arith.constant 0 : i32
    return %arg0, %c0_i32 : i32, i32
  }
  func.func @transform_1(%arg0: i32, %arg1: memref<2xi32, #tpu.memory_space<smem>>) -> (i32, i32) {
    %c0_i32 = arith.constant 0 : i32
    %c0_i32_0 = arith.constant 0 : i32
    %c0_i32_1 = arith.constant 0 : i32
    return %c0_i32, %c0_i32_0 : i32, i32
  }
  func.func @transform_2(%arg0: i32, %arg1: memref<2xi32, #tpu.memory_space<smem>>) -> (i32, i32) {
    %c0_i32 = arith.constant 0 : i32
    %c0_i32_0 = arith.constant 0 : i32
    %c0_i32_1 = arith.constant 0 : i32
    return %c0_i32, %c0_i32_0 : i32, i32
  }
  func.func @transform_3(%arg0: i32, %arg1: memref<2xi32, #tpu.memory_space<smem>>) -> (i32, i32) {
    %c0_i32 = arith.constant 0 : i32
    %c0_i32_0 = arith.constant 0 : i32
    %c0_i32_1 = arith.constant 0 : i32
    return %c0_i32, %c0_i32_0 : i32, i32
  }
  func.func @transform_4(%arg0: i32, %arg1: memref<2xi32, #tpu.memory_space<smem>>) -> (i32, i32) {
    %c0_i32 = arith.constant 0 : i32
    %c0_i32_0 = arith.constant 0 : i32
    %c0_i32_1 = arith.constant 0 : i32
    return %c0_i32, %c0_i32_0 : i32, i32
  }
  func.func @transform_5(%arg0: i32, %arg1: memref<2xi32, #tpu.memory_space<smem>>) -> (i32, i32) {
    %c0_i32 = arith.constant 0 : i32
    %c0_i32_0 = arith.constant 0 : i32
    %c0_i32_1 = arith.constant 0 : i32
    return %c0_i32, %c0_i32_0 : i32, i32
  }
  func.func @transform_6(%arg0: i32, %arg1: memref<2xi32, #tpu.memory_space<smem>>) -> (i32, i32) {
    %c0_i32 = arith.constant 0 : i32
    %c0_i32_0 = arith.constant 0 : i32
    %c0_i32_1 = arith.constant 0 : i32
    return %c0_i32, %c0_i32_0 : i32, i32
  }
  func.func @transform_7(%arg0: i32, %arg1: memref<2xi32, #tpu.memory_space<smem>>) -> (i32, i32) {
    %c0_i32 = arith.constant 0 : i32
    %c0_i32_0 = arith.constant 0 : i32
    %c0_i32_1 = arith.constant 0 : i32
    return %c0_i32, %c0_i32_0 : i32, i32
  }
  func.func @transform_8(%arg0: i32, %arg1: memref<2xi32, #tpu.memory_space<smem>>) -> (i32, i32) {
    %c0_i32 = arith.constant 0 : i32
    %c0_i32_0 = arith.constant 0 : i32
    return %arg0, %c0_i32 : i32, i32
  }
  func.func @transform_9(%arg0: i32, %arg1: memref<2xi32, #tpu.memory_space<smem>>) -> (i32, i32, i32, i32) {
    %c0_i32 = arith.constant 0 : i32
    %c0_i32_0 = arith.constant 0 : i32
    %c0_i32_1 = arith.constant 0 : i32
    %c0_i32_2 = arith.constant 0 : i32
    return %arg0, %c0_i32, %c0_i32_0, %c0_i32_1 : i32, i32, i32, i32
  }
}

</mosaic_0001>

<llo_original>
// kernel: tpu_custom_call.1
$region0: #{tpu_custom_call.1}
  #allocation0 [shape = 'u32[]', space=smem, size = 0x4, offset = 0x4, fixed_abs, tag = 'smem constant byte address 0x4 - core index']
  #allocation1 [shape = 'u32[144,128]{1,0:T(1,128)}', space=vmem, size = 0x12000, scoped, tag = 'internal scratch']
  #allocation2 [shape = 's32[1]{0}', space=sflag, size = 0x4, scoped, tag = 'scoped memory for tpu_custom_call.1']
  #allocation3 [shape = 'u8[512]{0}', space=smem, size = 0x200, scoped, tag = 'prefetched SMEM operand 0']
  %s0 = inlined_call_operand.vmem [shape: s32[2], index: 0, kind: input, shape index: {}]
  %s1 = inlined_call_operand.vmem [shape: f32[16,32], index: 1, kind: input, shape index: {}]
  %s2 = inlined_call_operand.vmem [shape: bf16[32,192], index: 2, kind: input, shape index: {}]
  %s3 = inlined_call_operand.vmem [shape: f32[1,192], index: 3, kind: input, shape index: {}]
  %s4 = inlined_call_operand.vmem [shape: bf16[64,32], index: 4, kind: input, shape index: {}]
  %s5 = inlined_call_operand.vmem [shape: bf16[32,64], index: 5, kind: input, shape index: {}]
  %s6 = inlined_call_operand.vmem [shape: f32[1,64], index: 6, kind: input, shape index: {}]
  %s7 = inlined_call_operand.vmem [shape: bf16[64,32], index: 7, kind: input, shape index: {}]
  %s8 = inlined_call_operand.vmem [shape: f32[6,32], index: 8, kind: input, shape index: {}]
  %s9 = inlined_call_operand.hbm [shape: f32[16,32], index: 9, kind: output, shape index: {0}]
  %s10 = inlined_call_operand.hbm [shape: f32[2,4,8,8], index: 10, kind: output, shape index: {1}]
  %11 = xla_tuple %s9, %s10
  %s12 = sld [smem:[#allocation0]]
  $region73: #{tpu_custom_call.1} parent=0
    _
  %s14 = ssub.s32 1, %s12
  %s15 = scalar_select 0, %s14, %s12
  %s16 = sshll.u32 %s0, 4
  %s17 = int_to_ptr.vmem [resolvable:$true] %s16
  %19 = dma.vmem_to_smem %s17, 16, [#allocation3], [#allocation2]
  %20 = dma.done [#allocation2], 16
  %21 = sfence
  $region1: #{tpu_custom_call.1} parent=0
    #allocation4 [shape = 'u8[8192]{0}', space=vmem, size = 0x2000, scoped, tag = 'output window, operand 0']
    #allocation5 [shape = 's32[2]{0}', space=sflag, size = 0x8, scoped, tag = 'scoped memory for tpu_custom_call.1']
    #allocation6 [shape = 'u8[32768]{0}', space=vmem, size = 0x8000, scoped, tag = 'output window, operand 1']
    #allocation7 [shape = 's32[2]{0}', space=sflag, size = 0x8, scoped, tag = 'scoped memory for tpu_custom_call.1']
    %22 = vsyncpa [#allocation5], 0
    %s23 = scalar_lea.sflag [#allocation5], 1
    %24 = vsyncpa %s23, 0
    %25 = vsyncpa [#allocation7], 0
    %s26 = scalar_lea.sflag [#allocation7], 1
    %27 = vsyncpa %s26, 0
    loop: start=0, step=1, limit=4
    $region2: #{tpu_custom_call.1} parent=1 // loop_pre_header
      _
    $region3: #{tpu_custom_call.1} parent=1 // loop_header
      %s29 = sphi 0, %s33
      %p30 = scmp.ge.s32.totalorder %s29, 4
      %s39 = sphi 0, %s41
      %s42 = sphi 0, %s39
      %s43 = sphi 0, %s42
      %s59 = sphi 0, %s43
      %s63 = sphi 0, %s63
      %s65 = sphi 0, %s63
      %s66 = sphi 0, %s65
      %s80 = sphi 0, %s66
      %s84 = sphi 0, %s84
      %s86 = sphi 0, %s84
      %s87 = sphi 0, %s86
      %s101 = sphi 0, %s87
      %s105 = sphi 0, %s105
      %s107 = sphi 0, %s105
      %s108 = sphi 0, %s107
      %s122 = sphi 0, %s108
      %s126 = sphi 0, %s126
      %s128 = sphi 0, %s126
      %s129 = sphi 0, %s128
      %s143 = sphi 0, %s129
      %s147 = sphi 0, %s147
      %s149 = sphi 0, %s147
      %s150 = sphi 0, %s149
      %s164 = sphi 0, %s150
      %s168 = sphi 0, %s168
      %s170 = sphi 0, %s168
      %s171 = sphi 0, %s170
      %s185 = sphi 0, %s171
      %s189 = sphi 0, %s189
      %s191 = sphi 0, %s189
      %s192 = sphi 0, %s191
      %s206 = sphi 0, %s192
      %s212 = sphi 0, %s214
      %s215 = sphi 0, %s212
      %s216 = sphi 0, %s215
      %s232 = sphi 0, %s216
      %s238 = sphi 0, %s240
      %s241 = sphi 0, %s238
      %s242 = sphi 0, %s241
      %s258 = sphi 0, %s242
    $region4: #{tpu_custom_call.1} parent=1 // loop_header_branch
      %32 = sbr.rel (%p30) target = $region8
    $region5: #{tpu_custom_call.1} parent=1 // loop_body
      %s34 = ssub.s32 %s29, 1
      %s35 = ssub.s32 %s29, 2
      %s36 = sadd.s32 %s29, 1
      %s37 = ssub.s32 %s29, %s36
      %p38 = scmp.eq.s32.totalorder %s37, 0
      %s40 = sadd.s32 %s39, 1
      %s41 = scalar_select %p38, %s39, %s40
      %p44 = pneg %p38
      %p45 = scmp.eq.s32.totalorder %s29, 1
      %p46 = por %p44, %p45
      %p47 = scmp.ne.s32.totalorder %s39, %s42
      %p48 = scmp.eq.s32.totalorder %s29, 0
      %p49 = por %p47, %p48
      %p50 = scmp.ne.s32.totalorder %s39, %s42
      %p51 = scmp.eq.s32.totalorder %s34, 1
      %p52 = por %p50, %p51
      %p53 = scmp.ne.s32.totalorder %s42, %s43
      %p54 = scmp.eq.s32.totalorder %s34, 0
      %p55 = por %p53, %p54
      %p56 = scmp.ne.s32.totalorder %s42, %s43
      %p57 = scmp.eq.s32.totalorder %s35, 1
      %p58 = por %p56, %p57
      %p60 = scmp.ne.s32.totalorder %s43, %s59
      %p61 = scmp.eq.s32.totalorder %s35, 0
      %p62 = por %p60, %p61
      %s64 = sadd.s32 %s63, 1
      %p67 = scmp.eq.s32.totalorder %s29, 1
      %p68 = scmp.ne.s32.totalorder %s63, %s65
      %p69 = scmp.eq.s32.totalorder %s29, 0
      %p70 = por %p68, %p69
      %p71 = scmp.ne.s32.totalorder %s63, %s65
      %p72 = scmp.eq.s32.totalorder %s34, 1
      %p73 = por %p71, %p72
      %p74 = scmp.ne.s32.totalorder %s65, %s66
      %p75 = scmp.eq.s32.totalorder %s34, 0
      %p76 = por %p74, %p75
      %p77 = scmp.ne.s32.totalorder %s65, %s66
      %p78 = scmp.eq.s32.totalorder %s35, 1
      %p79 = por %p77, %p78
      %p81 = scmp.ne.s32.totalorder %s66, %s80
      %p82 = scmp.eq.s32.totalorder %s35, 0
      %p83 = por %p81, %p82
      %s85 = sadd.s32 %s84, 1
      %p88 = scmp.eq.s32.totalorder %s29, 1
      %p89 = scmp.ne.s32.totalorder %s84, %s86
      %p90 = scmp.eq.s32.totalorder %s29, 0
      %p91 = por %p89, %p90
      %p92 = scmp.ne.s32.totalorder %s84, %s86
      %p93 = scmp.eq.s32.totalorder %s34, 1
      %p94 = por %p92, %p93
      %p95 = scmp.ne.s32.totalorder %s86, %s87
      %p96 = scmp.eq.s32.totalorder %s34, 0
      %p97 = por %p95, %p96
      %p98 = scmp.ne.s32.totalorder %s86, %s87
      %p99 = scmp.eq.s32.totalorder %s35, 1
      %p100 = por %p98, %p99
      %p102 = scmp.ne.s32.totalorder %s87, %s101
      %p103 = scmp.eq.s32.totalorder %s35, 0
      %p104 = por %p102, %p103
      %s106 = sadd.s32 %s105, 1
      %p109 = scmp.eq.s32.totalorder %s29, 1
      %p110 = scmp.ne.s32.totalorder %s105, %s107
      %p111 = scmp.eq.s32.totalorder %s29, 0
      %p112 = por %p110, %p111
      %p113 = scmp.ne.s32.totalorder %s105, %s107
      %p114 = scmp.eq.s32.totalorder %s34, 1
      %p115 = por %p113, %p114
      %p116 = scmp.ne.s32.totalorder %s107, %s108
      %p117 = scmp.eq.s32.totalorder %s34, 0
      %p118 = por %p116, %p117
      %p119 = scmp.ne.s32.totalorder %s107, %s108
      %p120 = scmp.eq.s32.totalorder %s35, 1
      %p121 = por %p119, %p120
      %p123 = scmp.ne.s32.totalorder %s108, %s122
      %p124 = scmp.eq.s32.totalorder %s35, 0
      %p125 = por %p123, %p124
      %s127 = sadd.s32 %s126, 1
      %p130 = scmp.eq.s32.totalorder %s29, 1
      %p131 = scmp.ne.s32.totalorder %s126, %s128
      %p132 = scmp.eq.s32.totalorder %s29, 0
      %p133 = por %p131, %p132
      %p134 = scmp.ne.s32.totalorder %s126, %s128
      %p135 = scmp.eq.s32.totalorder %s34, 1
      %p136 = por %p134, %p135
      %p137 = scmp.ne.s32.totalorder %s128, %s129
      %p138 = scmp.eq.s32.totalorder %s34, 0
      %p139 = por %p137, %p138
      %p140 = scmp.ne.s32.totalorder %s128, %s129
      %p141 = scmp.eq.s32.totalorder %s35, 1
      %p142 = por %p140, %p141
      %p144 = scmp.ne.s32.totalorder %s129, %s143
      %p145 = scmp.eq.s32.totalorder %s35, 0
      %p146 = por %p144, %p145
      %s148 = sadd.s32 %s147, 1
      %p151 = scmp.eq.s32.totalorder %s29, 1
      %p152 = scmp.ne.s32.totalorder %s147, %s149
      %p153 = scmp.eq.s32.totalorder %s29, 0
      %p154 = por %p152, %p153
      %p155 = scmp.ne.s32.totalorder %s147, %s149
      %p156 = scmp.eq.s32.totalorder %s34, 1
      %p157 = por %p155, %p156
      %p158 = scmp.ne.s32.totalorder %s149, %s150
      %p159 = scmp.eq.s32.totalorder %s34, 0
      %p160 = por %p158, %p159
      %p161 = scmp.ne.s32.totalorder %s149, %s150
      %p162 = scmp.eq.s32.totalorder %s35, 1
      %p163 = por %p161, %p162
      %p165 = scmp.ne.s32.totalorder %s150, %s164
      %p166 = scmp.eq.s32.totalorder %s35, 0
      %p167 = por %p165, %p166
      %s169 = sadd.s32 %s168, 1
      %p172 = scmp.eq.s32.totalorder %s29, 1
      %p173 = scmp.ne.s32.totalorder %s168, %s170
      %p174 = scmp.eq.s32.totalorder %s29, 0
      %p175 = por %p173, %p174
      %p176 = scmp.ne.s32.totalorder %s168, %s170
      %p177 = scmp.eq.s32.totalorder %s34, 1
      %p178 = por %p176, %p177
      %p179 = scmp.ne.s32.totalorder %s170, %s171
      %p180 = scmp.eq.s32.totalorder %s34, 0
      %p181 = por %p179, %p180
      %p182 = scmp.ne.s32.totalorder %s170, %s171
      %p183 = scmp.eq.s32.totalorder %s35, 1
      %p184 = por %p182, %p183
      %p186 = scmp.ne.s32.totalorder %s171, %s185
      %p187 = scmp.eq.s32.totalorder %s35, 0
      %p188 = por %p186, %p187
      %s190 = sadd.s32 %s189, 1
      %p193 = scmp.eq.s32.totalorder %s29, 1
      %p194 = scmp.ne.s32.totalorder %s189, %s191
      %p195 = scmp.eq.s32.totalorder %s29, 0
      %p196 = por %p194, %p195
      %p197 = scmp.ne.s32.totalorder %s189, %s191
      %p198 = scmp.eq.s32.totalorder %s34, 1
      %p199 = por %p197, %p198
      %p200 = scmp.ne.s32.totalorder %s191, %s192
      %p201 = scmp.eq.s32.totalorder %s34, 0
      %p202 = por %p200, %p201
      %p203 = scmp.ne.s32.totalorder %s191, %s192
      %p204 = scmp.eq.s32.totalorder %s35, 1
      %p205 = por %p203, %p204
      %p207 = scmp.ne.s32.totalorder %s192, %s206
      %p208 = scmp.eq.s32.totalorder %s35, 0
      %p209 = por %p207, %p208
      %s210 = ssub.s32 %s29, %s36
      %p211 = scmp.eq.s32.totalorder %s210, 0
      %s213 = sadd.s32 %s212, 1
      %s214 = scalar_select %p211, %s212, %s213
      %p217 = pneg %p211
      %p218 = scmp.eq.s32.totalorder %s29, 1
      %p219 = por %p217, %p218
      %p220 = scmp.ne.s32.totalorder %s212, %s215
      %p221 = scmp.eq.s32.totalorder %s29, 0
      %p222 = por %p220, %p221
      %p223 = scmp.ne.s32.totalorder %s212, %s215
      %p224 = scmp.eq.s32.totalorder %s34, 1
      %p225 = por %p223, %p224
      %p226 = scmp.ne.s32.totalorder %s215, %s216
      %p227 = scmp.eq.s32.totalorder %s34, 0
      %p228 = por %p226, %p227
      %p229 = scmp.ne.s32.totalorder %s215, %s216
      %p230 = scmp.eq.s32.totalorder %s35, 1
      %p231 = por %p229, %p230
      %p233 = scmp.ne.s32.totalorder %s216, %s232
      %p234 = scmp.eq.s32.totalorder %s35, 0
      %p235 = por %p233, %p234
      %s236 = ssub.s32 %s29, %s36
      %p237 = scmp.eq.s32.totalorder %s236, 0
      %s239 = sadd.s32 %s238, 1
      %s240 = scalar_select %p237, %s238, %s239
      %p243 = pneg %p237
      %p244 = scmp.eq.s32.totalorder %s29, 1
      %p245 = por %p243, %p244
      %p246 = scmp.ne.s32.totalorder %s238, %s241
      %p247 = scmp.eq.s32.totalorder %s29, 0
      %p248 = por %p246, %p247
      %p249 = scmp.ne.s32.totalorder %s238, %s241
      %p250 = scmp.eq.s32.totalorder %s34, 1
      %p251 = por %p249, %p250
      %p252 = scmp.ne.s32.totalorder %s241, %s242
      %p253 = scmp.eq.s32.totalorder %s34, 0
      %p254 = por %p252, %p253
      %p255 = scmp.ne.s32.totalorder %s241, %s242
      %p256 = scmp.eq.s32.totalorder %s35, 1
      %p257 = por %p255, %p256
      %p259 = scmp.ne.s32.totalorder %s242, %s258
      %p260 = scmp.eq.s32.totalorder %s35, 0
      %p261 = por %p259, %p260
      %p262 = scmp.le.s32.totalorder 1, %s29
      %p263 = scmp.lt.s32.totalorder %s29, 3
      %p264 = pnand %p262, %p263
      %p265 = pneg %p264
      // Predicated region
      $region9: #{tpu_custom_call.1} parent=5 // pred_check
        _
      $region10: #{tpu_custom_call.1} parent=5 // pred_check_branch
        %267 = sbr.rel (%p264) target = $region12
      $region11: #{tpu_custom_call.1} parent=5 // pred_region
        %s268 = ssub.s32 %s29, 1
        // Predicated region
        $region13: #{tpu_custom_call.1} parent=11 // pred_check
          %p269 = pneg %p76
        $region14: #{tpu_custom_call.1} parent=11 // pred_check_branch
          %271 = sbr.rel (%p269) target = $region16
        $region15: #{tpu_custom_call.1} parent=11 // pred_region
          _
        $region16: #{tpu_custom_call.1} parent=11 // pred_fallthru
          _
        // Predicated region
        $region17: #{tpu_custom_call.1} parent=11 // pred_check
          %p272 = pneg %p97
        $region18: #{tpu_custom_call.1} parent=11 // pred_check_branch
          %274 = sbr.rel (%p272) target = $region20
        $region19: #{tpu_custom_call.1} parent=11 // pred_region
          _
        $region20: #{tpu_custom_call.1} parent=11 // pred_fallthru
          _
        // Predicated region
        $region21: #{tpu_custom_call.1} parent=11 // pred_check
          %p275 = pneg %p118
        $region22: #{tpu_custom_call.1} parent=11 // pred_check_branch
          %277 = sbr.rel (%p275) target = $region24
        $region23: #{tpu_custom_call.1} parent=11 // pred_region
          _
        $region24: #{tpu_custom_call.1} parent=11 // pred_fallthru
          _
        // Predicated region
        $region25: #{tpu_custom_call.1} parent=11 // pred_check
          %p278 = pneg %p139
        $region26: #{tpu_custom_call.1} parent=11 // pred_check_branch
          %280 = sbr.rel (%p278) target = $region28
        $region27: #{tpu_custom_call.1} parent=11 // pred_region
          _
        $region28: #{tpu_custom_call.1} parent=11 // pred_fallthru
          _
        // Predicated region
        $region29: #{tpu_custom_call.1} parent=11 // pred_check
          %p281 = pneg %p160
        $region30: #{tpu_custom_call.1} parent=11 // pred_check_branch
          %283 = sbr.rel (%p281) target = $region32
        $region31: #{tpu_custom_call.1} parent=11 // pred_region
          _
        $region32: #{tpu_custom_call.1} parent=11 // pred_fallthru
          _
        // Predicated region
        $region33: #{tpu_custom_call.1} parent=11 // pred_check
          %p284 = pneg %p181
        $region34: #{tpu_custom_call.1} parent=11 // pred_check_branch
          %286 = sbr.rel (%p284) target = $region36
        $region35: #{tpu_custom_call.1} parent=11 // pred_region
          _
        $region36: #{tpu_custom_call.1} parent=11 // pred_fallthru
          _
        // Predicated region
        $region37: #{tpu_custom_call.1} parent=11 // pred_check
          %p287 = pneg %p202
        $region38: #{tpu_custom_call.1} parent=11 // pred_check_branch
          %289 = sbr.rel (%p287) target = $region40
        $region39: #{tpu_custom_call.1} parent=11 // pred_region
          _
        $region40: #{tpu_custom_call.1} parent=11 // pred_fallthru
          _
      $region12: #{tpu_custom_call.1} parent=5 // pred_fallthru
        _
      %p290 = scmp.lt.s32.totalorder %s29, 2
      // Predicated region
      $region41: #{tpu_custom_call.1} parent=5 // pred_check
        %p291 = pneg %p290
      $region42: #{tpu_custom_call.1} parent=5 // pred_check_branch
        %293 = sbr.rel (%p291) target = $region44
      $region43: #{tpu_custom_call.1} parent=5 // pred_region
        // Predicated region
        $region45: #{tpu_custom_call.1} parent=43 // pred_check
          %p294 = pneg %p49
        $region46: #{tpu_custom_call.1} parent=43 // pred_check_branch
          %296 = sbr.rel (%p294) target = $region48
        $region47: #{tpu_custom_call.1} parent=43 // pred_region
          %p297 = scmp.lt.s32.totalorder %s29, 1
          %s298 = scalar_select %p297, %s29, 1
          %s299 = smul.addr %s298, 8
          %s300 = scalar_lea.vmem %s1, %s299
        $region48: #{tpu_custom_call.1} parent=43 // pred_fallthru
          _
      $region44: #{tpu_custom_call.1} parent=5 // pred_fallthru
        _
      %p301 = scmp.le.s32.totalorder 1, %s29
      %p302 = scmp.lt.s32.totalorder %s29, 3
      %p303 = pnand %p301, %p302
      %p304 = pneg %p303
      // Predicated region
      $region49: #{tpu_custom_call.1} parent=5 // pred_check
        _
      $region50: #{tpu_custom_call.1} parent=5 // pred_check_branch
        %306 = sbr.rel (%p303) target = $region52
      $region51: #{tpu_custom_call.1} parent=5 // pred_region
        %s307 = ssub.s32 %s29, 1
        %p308 = scmp.lt.s32.totalorder %s34, 1
        %s309 = scalar_select %p308, %s34, 1
        %s310 = smul.addr %s309, 8
        %s311 = scalar_lea.vmem %s1, %s310
        %p312 = pneg %p55
        %p313 = pneg %p52
        %p314 = pneg %p76
        %p315 = pneg %p73
        %p316 = pneg %p97
        %p317 = pneg %p94
        %p318 = pneg %p118
        %p319 = pneg %p115
        %p320 = pneg %p139
        %p321 = pneg %p136
        %p322 = pneg %p160
        %p323 = pneg %p157
        %p324 = pneg %p181
        %p325 = pneg %p178
        %p326 = pneg %p202
        %p327 = pneg %p199
        %p328 = pneg %p228
        %p329 = pneg %p225
        %s330 = sand.u32 %s215, 1
        %s331 = scalar_lea.sflag [#allocation5], %s330
        %s332 = sand.u32 %s215, 1
        %s333 = smul.addr %s332, 8
        %s334 = scalar_lea.vmem [#allocation4], %s333
        %p335 = pneg %p254
        %p336 = pneg %p251
        %s337 = sand.u32 %s241, 1
        %s338 = scalar_lea.sflag [#allocation7], %s337
        %s339 = sand.u32 %s241, 1
        %s340 = smul.addr %s339, 32
        %s341 = scalar_lea.vmem [#allocation6], %s340
        %p342 = scmp.lt.s32.totalorder %s34, 1
        %s343 = scalar_select %p342, %s34, 1
        %s344 = smul.addr %s343, 8
        %s345 = scalar_lea.vmem %s1, %s344
        %v347 = vld [vmem:[%s345] sm:$0xff]
        %v348 = vpack.c.bf16 %v347, %v347
        %v349 = vld [vmem:[%s2] sm:$0xff]
        %v350 = vld [vmem:[%s2 + $0x8] sm:$0xff]
        %v351 = vld [vmem:[%s2 + $0x10] sm:$0xff]
        %v352 = vld [vmem:[%s2 + $0x18] sm:$0xff]
        %v353 = vld [vmem:[%s3] sm:$0x3]
        %v355 = vlaneseq
        %v356 = vshrl.u32 %v355, 7
        %v357 = vsub.s32 0, %v356
        %v358 = vrot.slane %v353, %v357
        %v359 = vlaneseq
        %v360 = vshrl.u32 %v359, 7
        %v361 = vsub.s32 1, %v360
        %v362 = vrot.slane %v353, %v361
        %v369 = vunpack.c.l.b16 %v349
        %v370 = vunpack.c.h.b16 %v349
        %v371 = vunpack.c.l.b16 %v350
        %v372 = vunpack.c.h.b16 %v350
        %v373 = vunpack.c.l.b16 %v351
        %v374 = vunpack.c.h.b16 %v351
        %v375 = vunpack.c.l.b16 %v352
        %v376 = vunpack.c.h.b16 %v352
        %v377 = vpack.c.b16 %v371, %v369
        %v378 = vpack.c.b16 %v372, %v370
        %v379 = vpack.c.b16 %v375, %v373
        %v380 = vpack.c.b16 %v376, %v374
        %vm385 = vcmask 261120
        %v387 = vsel %vm385, %v348, 0
        %389 = vmatprep.subr.bf16.mxu0 %v378
        %390 = vmatpush1.bf16.msra.mxu0 %v377
        %391 = vmatprep.subr.bf16.mxu0 %v380
        %392 = vmatpush1.bf16.msra.mxu0 %v379
        %393 = vmatprep.subr.bf16.mxu0 0
        %394 = vmatpush1.bf16.msra.mxu0 0
        %395 = vmatprep.subr.bf16.mxu0 0
        %396 = vmatpush1.bf16.msra.mxu0 0
        %397 = vmatprep.subr.bf16.mxu0 0
        %398 = vmatpush1.bf16.msra.mxu0 0
        %399 = vmatprep.subr.bf16.mxu0 0
        %400 = vmatpush1.bf16.msra.mxu0 0
        %401 = vmatprep.subr.bf16.mxu0 0
        %402 = vmatpush1.bf16.msra.mxu0 0
        %403 = vmatprep.subr.bf16.mxu0 0
        %404 = vmatpush1.bf16.msra.mxu0 0
        %405 = vmatprep.subr.bf16.mxu0 0
        %406 = vmatpush1.bf16.msra.mxu0 0
        %407 = vmatprep.subr.bf16.mxu0 0
        %408 = vmatpush1.bf16.msra.mxu0 0
        %409 = vmatprep.subr.bf16.mxu0 0
        %410 = vmatpush1.bf16.msra.mxu0 0
        %411 = vmatprep.subr.bf16.mxu0 0
        %412 = vmatpush1.bf16.msra.mxu0 0
        %413 = vmatprep.subr.bf16.mxu0 0
        %414 = vmatpush1.bf16.msra.mxu0 0
        %415 = vmatprep.subr.bf16.mxu0 0
        %416 = vmatpush1.bf16.msra.mxu0 0
        %417 = vmatprep.subr.bf16.mxu0 0
        %418 = vmatpush1.bf16.msra.mxu0 0
        %419 = vmatprep.subr.bf16.mxu0 0
        %420 = vmatpush1.bf16.msra.mxu0 0
        %421 = vmatprep.mubr.bf16.mxu0 0
        %422 = vmatmul.mubr.bf16.gmra.mrb[0].mxu0 %v387
        %v423 = vpop.f32.mrb[0].mxu0
        %v424 = vadd.f32 %v358, %v423
        %v425 = vpop.f32.mrb[0].mxu0
        %v426 = vadd.f32 %v362, %v425
        %v427 = vpop.f32.mrb[0].mxu0
        %v428 = vpop.f32.mrb[0].mxu0
        %429 = vdwg.mxu0
        %431 = vrot.lane.b32.xlu0 %v424, 112
        %v432 = vpop.permute.xlu0 %431
        %434 = vrot.lane.b32.xlu0 %v424, 96
        %v435 = vpop.permute.xlu0 %434
        %437 = vrot.lane.b32.xlu0 %v424, 80
        %v438 = vpop.permute.xlu0 %437
        %v440 = vpack.c.bf16 %v424, %v424
        %v441 = vpack.c.bf16 %v432, %v432
        %v442 = vpack.c.bf16 %v435, %v435
        %v443 = vpack.c.bf16 %v438, %v438
        %445 = vrot.lane.b32.xlu0 %v426, 112
        %v446 = vpop.permute.xlu0 %445
        %448 = vrot.lane.b32.xlu0 %v426, 96
        %v449 = vpop.permute.xlu0 %448
        %451 = vrot.lane.b32.xlu0 %v426, 80
        %v452 = vpop.permute.xlu0 %451
        %v454 = vpack.c.bf16 %v426, %v426
        %v455 = vpack.c.bf16 %v446, %v446
        %v456 = vpack.c.bf16 %v449, %v449
        %v457 = vpack.c.bf16 %v452, %v452
        %s458 = sld [smem:[#allocation3 + %s34]]
        %v459 = vlaneseq
        %v460 = vand.u32 %v459, 127
        %v461 = vstv %s458
        %vm462 = vcmp.ge.s32.totalorder %v460, %v461
        %v463 = vsel %vm462, -1e+09, 0.0
        %465 = vrot.lane.b32.xlu0 %v440, 64
        %v466 = vpop.permute.xlu0 %465
        %vm467 = vcmask 130048
        %v469 = vsel %vm467, %v440, 0
        %v472 = vsel %vm467, %v466, 0
        %474 = vmatprep.subr.bf16.mxu0 0
        %475 = vmatpush1.bf16.xpose.msra.mxu0 %v472
        %476 = vmatprep.subr.bf16.mxu0 0
        %477 = vmatpush1.bf16.xpose.msra.mxu0 0
        %478 = vmatprep.subr.bf16.mxu0 0
        %479 = vmatpush1.bf16.xpose.msra.mxu0 0
        %480 = vmatprep.subr.bf16.mxu0 0
        %481 = vmatpush1.bf16.xpose.msra.mxu0 0
        %482 = vmatprep.subr.bf16.mxu0 0
        %483 = vmatpush1.bf16.xpose.msra.mxu0 0
        %484 = vmatprep.subr.bf16.mxu0 0
        %485 = vmatpush1.bf16.xpose.msra.mxu0 0
        %486 = vmatprep.subr.bf16.mxu0 0
        %487 = vmatpush1.bf16.xpose.msra.mxu0 0
        %488 = vmatprep.subr.bf16.mxu0 0
        %489 = vmatpush1.bf16.xpose.msra.mxu0 0
        %490 = vmatprep.subr.bf16.mxu0 0
        %491 = vmatpush1.bf16.xpose.msra.mxu0 0
        %492 = vmatprep.subr.bf16.mxu0 0
        %493 = vmatpush1.bf16.xpose.msra.mxu0 0
        %494 = vmatprep.subr.bf16.mxu0 0
        %495 = vmatpush1.bf16.xpose.msra.mxu0 0
        %496 = vmatprep.subr.bf16.mxu0 0
        %497 = vmatpush1.bf16.xpose.msra.mxu0 0
        %498 = vmatprep.subr.bf16.mxu0 0
        %499 = vmatpush1.bf16.xpose.msra.mxu0 0
        %500 = vmatprep.subr.bf16.mxu0 0
        %501 = vmatpush1.bf16.xpose.msra.mxu0 0
        %502 = vmatprep.subr.bf16.mxu0 0
        %503 = vmatpush1.bf16.xpose.msra.mxu0 0
        %504 = vmatprep.subr.bf16.mxu0 0
        %505 = vmatpush1.bf16.xpose.msra.mxu0 0
        %506 = vmatprep.mubr.bf16.mxu0 0
        %507 = vmatmul.mubr.bf16.gmra.mrb[0].mxu0 %v469
        %v508 = vpop.f32.mrb[0].mxu0
        %v509 = vadd.f32 %v463, %v508
        %v510 = vpop.f32.mrb[0].mxu0
        %v511 = vpop.f32.mrb[0].mxu0
        %v512 = vpop.f32.mrb[0].mxu0
        %513 = vdwg.mxu0
        %515 = vrot.lane.b32.xlu0 %v441, 64
        %v516 = vpop.permute.xlu0 %515
        %v518 = vsel %vm467, %v441, 0
        %v521 = vsel %vm467, %v516, 0
        %523 = vmatprep.subr.bf16.mxu0 0
        %524 = vmatpush1.bf16.xpose.msra.mxu0 %v521
        %525 = vmatprep.subr.bf16.mxu0 0
        %526 = vmatpush1.bf16.xpose.msra.mxu0 0
        %527 = vmatprep.subr.bf16.mxu0 0
        %528 = vmatpush1.bf16.xpose.msra.mxu0 0
        %529 = vmatprep.subr.bf16.mxu0 0
        %530 = vmatpush1.bf16.xpose.msra.mxu0 0
        %531 = vmatprep.subr.bf16.mxu0 0
        %532 = vmatpush1.bf16.xpose.msra.mxu0 0
        %533 = vmatprep.subr.bf16.mxu0 0
        %534 = vmatpush1.bf16.xpose.msra.mxu0 0
        %535 = vmatprep.subr.bf16.mxu0 0
        %536 = vmatpush1.bf16.xpose.msra.mxu0 0
        %537 = vmatprep.subr.bf16.mxu0 0
        %538 = vmatpush1.bf16.xpose.msra.mxu0 0
        %539 = vmatprep.subr.bf16.mxu0 0
        %540 = vmatpush1.bf16.xpose.msra.mxu0 0
        %541 = vmatprep.subr.bf16.mxu0 0
        %542 = vmatpush1.bf16.xpose.msra.mxu0 0
        %543 = vmatprep.subr.bf16.mxu0 0
        %544 = vmatpush1.bf16.xpose.msra.mxu0 0
        %545 = vmatprep.subr.bf16.mxu0 0
        %546 = vmatpush1.bf16.xpose.msra.mxu0 0
        %547 = vmatprep.subr.bf16.mxu0 0
        %548 = vmatpush1.bf16.xpose.msra.mxu0 0
        %549 = vmatprep.subr.bf16.mxu0 0
        %550 = vmatpush1.bf16.xpose.msra.mxu0 0
        %551 = vmatprep.subr.bf16.mxu0 0
        %552 = vmatpush1.bf16.xpose.msra.mxu0 0
        %553 = vmatprep.subr.bf16.mxu0 0
        %554 = vmatpush1.bf16.xpose.msra.mxu0 0
        %555 = vmatprep.mubr.bf16.mxu0 0
        %556 = vmatmul.mubr.bf16.gmra.mrb[0].mxu0 %v518
        %v557 = vpop.f32.mrb[0].mxu0
        %v558 = vadd.f32 %v463, %v557
        %v559 = vpop.f32.mrb[0].mxu0
        %v560 = vpop.f32.mrb[0].mxu0
        %v561 = vpop.f32.mrb[0].mxu0
        %562 = vdwg.mxu0
        %564 = vrot.lane.b32.xlu0 %v442, 64
        %v565 = vpop.permute.xlu0 %564
        %v567 = vsel %vm467, %v442, 0
        %v570 = vsel %vm467, %v565, 0
        %572 = vmatprep.subr.bf16.mxu0 0
        %573 = vmatpush1.bf16.xpose.msra.mxu0 %v570
        %574 = vmatprep.subr.bf16.mxu0 0
        %575 = vmatpush1.bf16.xpose.msra.mxu0 0
        %576 = vmatprep.subr.bf16.mxu0 0
        %577 = vmatpush1.bf16.xpose.msra.mxu0 0
        %578 = vmatprep.subr.bf16.mxu0 0
        %579 = vmatpush1.bf16.xpose.msra.mxu0 0
        %580 = vmatprep.subr.bf16.mxu0 0
        %581 = vmatpush1.bf16.xpose.msra.mxu0 0
        %582 = vmatprep.subr.bf16.mxu0 0
        %583 = vmatpush1.bf16.xpose.msra.mxu0 0
        %584 = vmatprep.subr.bf16.mxu0 0
        %585 = vmatpush1.bf16.xpose.msra.mxu0 0
        %586 = vmatprep.subr.bf16.mxu0 0
        %587 = vmatpush1.bf16.xpose.msra.mxu0 0
        %588 = vmatprep.subr.bf16.mxu0 0
        %589 = vmatpush1.bf16.xpose.msra.mxu0 0
        %590 = vmatprep.subr.bf16.mxu0 0
        %591 = vmatpush1.bf16.xpose.msra.mxu0 0
        %592 = vmatprep.subr.bf16.mxu0 0
        %593 = vmatpush1.bf16.xpose.msra.mxu0 0
        %594 = vmatprep.subr.bf16.mxu0 0
        %595 = vmatpush1.bf16.xpose.msra.mxu0 0
        %596 = vmatprep.subr.bf16.mxu0 0
        %597 = vmatpush1.bf16.xpose.msra.mxu0 0
        %598 = vmatprep.subr.bf16.mxu0 0
        %599 = vmatpush1.bf16.xpose.msra.mxu0 0
        %600 = vmatprep.subr.bf16.mxu0 0
        %601 = vmatpush1.bf16.xpose.msra.mxu0 0
        %602 = vmatprep.subr.bf16.mxu0 0
        %603 = vmatpush1.bf16.xpose.msra.mxu0 0
        %604 = vmatprep.mubr.bf16.mxu0 0
        %605 = vmatmul.mubr.bf16.gmra.mrb[0].mxu0 %v567
        %v606 = vpop.f32.mrb[0].mxu0
        %v607 = vadd.f32 %v463, %v606
        %v608 = vpop.f32.mrb[0].mxu0
        %v609 = vpop.f32.mrb[0].mxu0
        %v610 = vpop.f32.mrb[0].mxu0
        %611 = vdwg.mxu0
        %613 = vrot.lane.b32.xlu0 %v443, 64
        %v614 = vpop.permute.xlu0 %613
        %v616 = vsel %vm467, %v443, 0
        %v619 = vsel %vm467, %v614, 0
        %621 = vmatprep.subr.bf16.mxu0 0
        %622 = vmatpush1.bf16.xpose.msra.mxu0 %v619
        %623 = vmatprep.subr.bf16.mxu0 0
        %624 = vmatpush1.bf16.xpose.msra.mxu0 0
        %625 = vmatprep.subr.bf16.mxu0 0
        %626 = vmatpush1.bf16.xpose.msra.mxu0 0
        %627 = vmatprep.subr.bf16.mxu0 0
        %628 = vmatpush1.bf16.xpose.msra.mxu0 0
        %629 = vmatprep.subr.bf16.mxu0 0
        %630 = vmatpush1.bf16.xpose.msra.mxu0 0
        %631 = vmatprep.subr.bf16.mxu0 0
        %632 = vmatpush1.bf16.xpose.msra.mxu0 0
        %633 = vmatprep.subr.bf16.mxu0 0
        %634 = vmatpush1.bf16.xpose.msra.mxu0 0
        %635 = vmatprep.subr.bf16.mxu0 0
        %636 = vmatpush1.bf16.xpose.msra.mxu0 0
        %637 = vmatprep.subr.bf16.mxu0 0
        %638 = vmatpush1.bf16.xpose.msra.mxu0 0
        %639 = vmatprep.subr.bf16.mxu0 0
        %640 = vmatpush1.bf16.xpose.msra.mxu0 0
        %641 = vmatprep.subr.bf16.mxu0 0
        %642 = vmatpush1.bf16.xpose.msra.mxu0 0
        %643 = vmatprep.subr.bf16.mxu0 0
        %644 = vmatpush1.bf16.xpose.msra.mxu0 0
        %645 = vmatprep.subr.bf16.mxu0 0
        %646 = vmatpush1.bf16.xpose.msra.mxu0 0
        %647 = vmatprep.subr.bf16.mxu0 0
        %648 = vmatpush1.bf16.xpose.msra.mxu0 0
        %649 = vmatprep.subr.bf16.mxu0 0
        %650 = vmatpush1.bf16.xpose.msra.mxu0 0
        %651 = vmatprep.subr.bf16.mxu0 0
        %652 = vmatpush1.bf16.xpose.msra.mxu0 0
        %653 = vmatprep.mubr.bf16.mxu0 0
        %654 = vmatmul.mubr.bf16.gmra.mrb[0].mxu0 %v616
        %v655 = vpop.f32.mrb[0].mxu0
        %v656 = vadd.f32 %v463, %v655
        %v657 = vpop.f32.mrb[0].mxu0
        %v658 = vpop.f32.mrb[0].mxu0
        %v659 = vpop.f32.mrb[0].mxu0
        %660 = vdwg.mxu0
        %vm661 = vcmask 64512
        %v662 = vsel %vm661, %v509, -inf
        %663 = vmax.xlane.f32.xlu0 %v662
        %v664 = vpop.xlane.xlu0 %663
        %v665 = vsel %vm661, %v558, -inf
        %666 = vmax.xlane.f32.xlu0 %v665
        %v667 = vpop.xlane.xlu0 %666
        %v668 = vsel %vm661, %v607, -inf
        %669 = vmax.xlane.f32.xlu0 %v668
        %v670 = vpop.xlane.xlu0 %669
        %v671 = vsel %vm661, %v656, -inf
        %672 = vmax.xlane.f32.xlu0 %v671
        %v673 = vpop.xlane.xlu0 %672
        %v674 = vsub.f32 %v509, %v664
        %v675 = vsub.f32 %v558, %v667
        %v676 = vsub.f32 %v607, %v670
        %v677 = vsub.f32 %v656, %v673
        %v678 = vmul.f32 %v674, 1.442695
        %v679 = vpow.pop %v678
        %v680 = vmul.f32 %v675, 1.442695
        %v681 = vpow.pop %v680
        %v682 = vmul.f32 %v676, 1.442695
        %v683 = vpow.pop %v682
        %v684 = vmul.f32 %v677, 1.442695
        %v685 = vpow.pop %v684
        %v686 = vsel %vm661, %v679, 0.0
        %687 = vadd.xlane.f32.xlu0 %v686
        %v688 = vpop.xlane.xlu0 %687
        %v689 = vsel %vm661, %v681, 0.0
        %690 = vadd.xlane.f32.xlu0 %v689
        %v691 = vpop.xlane.xlu0 %690
        %v692 = vsel %vm661, %v683, 0.0
        %693 = vadd.xlane.f32.xlu0 %v692
        %v694 = vpop.xlane.xlu0 %693
        %v695 = vsel %vm661, %v685, 0.0
        %696 = vadd.xlane.f32.xlu0 %v695
        %v697 = vpop.xlane.xlu0 %696
        %v698 = vrcp.pop %v688
        %v699 = vrcp.pop %v691
        %v700 = vrcp.pop %v694
        %v701 = vrcp.pop %v697
        %v702 = vmul.f32 %v679, %v698
        %v703 = vmul.f32 %v681, %v699
        %v704 = vmul.f32 %v683, %v700
        %v705 = vmul.f32 %v685, %v701
        %706 = vst.msk [vmem:[%s341] sm:$0xff] %vm661, %v702
        %707 = vst.msk [vmem:[%s341 + $0x8] sm:$0xff] %vm661, %v703
        %708 = vst.msk [vmem:[%s341 + $0x10] sm:$0xff] %vm661, %v704
        %709 = vst.msk [vmem:[%s341 + $0x18] sm:$0xff] %vm661, %v705
        %v710 = vpack.c.bf16 %v702, %v702
        %v711 = vpack.c.bf16 %v703, %v703
        %v712 = vpack.c.bf16 %v704, %v704
        %v713 = vpack.c.bf16 %v705, %v705
        %v715 = vsel %vm661, %v710, 0
        %vm717 = vcmask 1043456
        %v719 = vsel %vm717, %v454, 0
        %721 = vmatprep.subr.bf16.mxu0 0
        %722 = vmatpush1.bf16.msra.mxu0 %v719
        %723 = vmatprep.subr.bf16.mxu0 0
        %724 = vmatpush1.bf16.msra.mxu0 0
        %725 = vmatprep.subr.bf16.mxu0 0
        %726 = vmatpush1.bf16.msra.mxu0 0
        %727 = vmatprep.subr.bf16.mxu0 0
        %728 = vmatpush1.bf16.msra.mxu0 0
        %729 = vmatprep.subr.bf16.mxu0 0
        %730 = vmatpush1.bf16.msra.mxu0 0
        %731 = vmatprep.subr.bf16.mxu0 0
        %732 = vmatpush1.bf16.msra.mxu0 0
        %733 = vmatprep.subr.bf16.mxu0 0
        %734 = vmatpush1.bf16.msra.mxu0 0
        %735 = vmatprep.subr.bf16.mxu0 0
        %736 = vmatpush1.bf16.msra.mxu0 0
        %737 = vmatprep.subr.bf16.mxu0 0
        %738 = vmatpush1.bf16.msra.mxu0 0
        %739 = vmatprep.subr.bf16.mxu0 0
        %740 = vmatpush1.bf16.msra.mxu0 0
        %741 = vmatprep.subr.bf16.mxu0 0
        %742 = vmatpush1.bf16.msra.mxu0 0
        %743 = vmatprep.subr.bf16.mxu0 0
        %744 = vmatpush1.bf16.msra.mxu0 0
        %745 = vmatprep.subr.bf16.mxu0 0
        %746 = vmatpush1.bf16.msra.mxu0 0
        %747 = vmatprep.subr.bf16.mxu0 0
        %748 = vmatpush1.bf16.msra.mxu0 0
        %749 = vmatprep.subr.bf16.mxu0 0
        %750 = vmatpush1.bf16.msra.mxu0 0
        %751 = vmatprep.subr.bf16.mxu0 0
        %752 = vmatpush1.bf16.msra.mxu0 0
        %753 = vmatprep.mubr.bf16.mxu0 0
        %754 = vmatmul.mubr.bf16.gmra.mrb[0].mxu0 %v715
        %v755 = vpop.f32.mrb[0].mxu0
        %v756 = vadd.f32 0.0, %v755
        %v757 = vpop.f32.mrb[0].mxu0
        %v758 = vpop.f32.mrb[0].mxu0
        %v759 = vpop.f32.mrb[0].mxu0
        %760 = vdwg.mxu0
        %v762 = vsel %vm661, %v711, 0
        %v765 = vsel %vm717, %v455, 0
        %767 = vmatprep.subr.bf16.mxu0 0
        %768 = vmatpush1.bf16.msra.mxu0 %v765
        %769 = vmatprep.subr.bf16.mxu0 0
        %770 = vmatpush1.bf16.msra.mxu0 0
        %771 = vmatprep.subr.bf16.mxu0 0
        %772 = vmatpush1.bf16.msra.mxu0 0
        %773 = vmatprep.subr.bf16.mxu0 0
        %774 = vmatpush1.bf16.msra.mxu0 0
        %775 = vmatprep.subr.bf16.mxu0 0
        %776 = vmatpush1.bf16.msra.mxu0 0
        %777 = vmatprep.subr.bf16.mxu0 0
        %778 = vmatpush1.bf16.msra.mxu0 0
        %779 = vmatprep.subr.bf16.mxu0 0
        %780 = vmatpush1.bf16.msra.mxu0 0
        %781 = vmatprep.subr.bf16.mxu0 0
        %782 = vmatpush1.bf16.msra.mxu0 0
        %783 = vmatprep.subr.bf16.mxu0 0
        %784 = vmatpush1.bf16.msra.mxu0 0
        %785 = vmatprep.subr.bf16.mxu0 0
        %786 = vmatpush1.bf16.msra.mxu0 0
        %787 = vmatprep.subr.bf16.mxu0 0
        %788 = vmatpush1.bf16.msra.mxu0 0
        %789 = vmatprep.subr.bf16.mxu0 0
        %790 = vmatpush1.bf16.msra.mxu0 0
        %791 = vmatprep.subr.bf16.mxu0 0
        %792 = vmatpush1.bf16.msra.mxu0 0
        %793 = vmatprep.subr.bf16.mxu0 0
        %794 = vmatpush1.bf16.msra.mxu0 0
        %795 = vmatprep.subr.bf16.mxu0 0
        %796 = vmatpush1.bf16.msra.mxu0 0
        %797 = vmatprep.subr.bf16.mxu0 0
        %798 = vmatpush1.bf16.msra.mxu0 0
        %799 = vmatprep.mubr.bf16.mxu0 0
        %800 = vmatmul.mubr.bf16.gmra.mrb[0].mxu0 %v762
        %v801 = vpop.f32.mrb[0].mxu0
        %v802 = vadd.f32 0.0, %v801
        %v803 = vpop.f32.mrb[0].mxu0
        %v804 = vpop.f32.mrb[0].mxu0
        %v805 = vpop.f32.mrb[0].mxu0
        %806 = vdwg.mxu0
        %v808 = vsel %vm661, %v712, 0
        %v811 = vsel %vm717, %v456, 0
        %813 = vmatprep.subr.bf16.mxu0 0
        %814 = vmatpush1.bf16.msra.mxu0 %v811
        %815 = vmatprep.subr.bf16.mxu0 0
        %816 = vmatpush1.bf16.msra.mxu0 0
        %817 = vmatprep.subr.bf16.mxu0 0
        %818 = vmatpush1.bf16.msra.mxu0 0
        %819 = vmatprep.subr.bf16.mxu0 0
        %820 = vmatpush1.bf16.msra.mxu0 0
        %821 = vmatprep.subr.bf16.mxu0 0
        %822 = vmatpush1.bf16.msra.mxu0 0
        %823 = vmatprep.subr.bf16.mxu0 0
        %824 = vmatpush1.bf16.msra.mxu0 0
        %825 = vmatprep.subr.bf16.mxu0 0
        %826 = vmatpush1.bf16.msra.mxu0 0
        %827 = vmatprep.subr.bf16.mxu0 0
        %828 = vmatpush1.bf16.msra.mxu0 0
        %829 = vmatprep.subr.bf16.mxu0 0
        %830 = vmatpush1.bf16.msra.mxu0 0
        %831 = vmatprep.subr.bf16.mxu0 0
        %832 = vmatpush1.bf16.msra.mxu0 0
        %833 = vmatprep.subr.bf16.mxu0 0
        %834 = vmatpush1.bf16.msra.mxu0 0
        %835 = vmatprep.subr.bf16.mxu0 0
        %836 = vmatpush1.bf16.msra.mxu0 0
        %837 = vmatprep.subr.bf16.mxu0 0
        %838 = vmatpush1.bf16.msra.mxu0 0
        %839 = vmatprep.subr.bf16.mxu0 0
        %840 = vmatpush1.bf16.msra.mxu0 0
        %841 = vmatprep.subr.bf16.mxu0 0
        %842 = vmatpush1.bf16.msra.mxu0 0
        %843 = vmatprep.subr.bf16.mxu0 0
        %844 = vmatpush1.bf16.msra.mxu0 0
        %845 = vmatprep.mubr.bf16.mxu0 0
        %846 = vmatmul.mubr.bf16.gmra.mrb[0].mxu0 %v808
        %v847 = vpop.f32.mrb[0].mxu0
        %v848 = vadd.f32 0.0, %v847
        %v849 = vpop.f32.mrb[0].mxu0
        %v850 = vpop.f32.mrb[0].mxu0
        %v851 = vpop.f32.mrb[0].mxu0
        %852 = vdwg.mxu0
        %v854 = vsel %vm661, %v713, 0
        %v857 = vsel %vm717, %v457, 0
        %859 = vmatprep.subr.bf16.mxu0 0
        %860 = vmatpush1.bf16.msra.mxu0 %v857
        %861 = vmatprep.subr.bf16.mxu0 0
        %862 = vmatpush1.bf16.msra.mxu0 0
        %863 = vmatprep.subr.bf16.mxu0 0
        %864 = vmatpush1.bf16.msra.mxu0 0
        %865 = vmatprep.subr.bf16.mxu0 0
        %866 = vmatpush1.bf16.msra.mxu0 0
        %867 = vmatprep.subr.bf16.mxu0 0
        %868 = vmatpush1.bf16.msra.mxu0 0
        %869 = vmatprep.subr.bf16.mxu0 0
        %870 = vmatpush1.bf16.msra.mxu0 0
        %871 = vmatprep.subr.bf16.mxu0 0
        %872 = vmatpush1.bf16.msra.mxu0 0
        %873 = vmatprep.subr.bf16.mxu0 0
        %874 = vmatpush1.bf16.msra.mxu0 0
        %875 = vmatprep.subr.bf16.mxu0 0
        %876 = vmatpush1.bf16.msra.mxu0 0
        %877 = vmatprep.subr.bf16.mxu0 0
        %878 = vmatpush1.bf16.msra.mxu0 0
        %879 = vmatprep.subr.bf16.mxu0 0
        %880 = vmatpush1.bf16.msra.mxu0 0
        %881 = vmatprep.subr.bf16.mxu0 0
        %882 = vmatpush1.bf16.msra.mxu0 0
        %883 = vmatprep.subr.bf16.mxu0 0
        %884 = vmatpush1.bf16.msra.mxu0 0
        %885 = vmatprep.subr.bf16.mxu0 0
        %886 = vmatpush1.bf16.msra.mxu0 0
        %887 = vmatprep.subr.bf16.mxu0 0
        %888 = vmatpush1.bf16.msra.mxu0 0
        %889 = vmatprep.subr.bf16.mxu0 0
        %890 = vmatpush1.bf16.msra.mxu0 0
        %891 = vmatprep.mubr.bf16.mxu0 0
        %892 = vmatmul.mubr.bf16.gmra.mrb[0].mxu0 %v854
        %v893 = vpop.f32.mrb[0].mxu0
        %v894 = vadd.f32 0.0, %v893
        %v895 = vpop.f32.mrb[0].mxu0
        %v896 = vpop.f32.mrb[0].mxu0
        %v897 = vpop.f32.mrb[0].mxu0
        %898 = vdwg.mxu0
        %900 = vrot.lane.b32.xlu0 %v802, 16
        %v901 = vpop.permute.xlu0 %900
        %904 = vrot.lane.b32.xlu0 %v848, 32
        %v905 = vpop.permute.xlu0 %904
        %908 = vrot.lane.b32.xlu0 %v894, 48
        %v909 = vpop.permute.xlu0 %908
        %v911 = vsel %vm467, %v756, %v901
        %v912 = vsel %vm385, %v911, %v905
        %vm913 = vcmask 392192
        %v914 = vsel %vm913, %v912, %v909
        %v915 = vld [vmem:[%s8] sm:$0x3f]
        %v916 = vpack.c.bf16 %v914, %v914
        %v917 = vld [vmem:[%s4] sm:$0xf]
        %v918 = vld [vmem:[%s4 + $0x4] sm:$0xf]
        %v919 = vld [vmem:[%s4 + $0x8] sm:$0xf]
        %v920 = vld [vmem:[%s4 + $0xc] sm:$0xf]
        %v921 = vld [vmem:[%s4 + $0x10] sm:$0xf]
        %v922 = vld [vmem:[%s4 + $0x14] sm:$0xf]
        %v923 = vld [vmem:[%s4 + $0x18] sm:$0xf]
        %v924 = vld [vmem:[%s4 + $0x1c] sm:$0xf]
        %v925 = vlaneseq
        %v926 = vshrl.u32 %v925, 7
        %v927 = vsub.s32 0, %v926
        %v928 = vrot.slane %v915, %v927
        %v937 = vunpack.c.l.b16 %v917
        %v938 = vunpack.c.l.b16 %v918
        %v939 = vunpack.c.l.b16 %v919
        %v940 = vunpack.c.l.b16 %v920
        %v941 = vunpack.c.l.b16 %v921
        %v942 = vunpack.c.l.b16 %v922
        %v943 = vunpack.c.l.b16 %v923
        %v944 = vunpack.c.l.b16 %v924
        %v945 = vpack.c.b16 %v938, %v937
        %v946 = vpack.c.b16 %v940, %v939
        %v947 = vpack.c.b16 %v942, %v941
        %v948 = vpack.c.b16 %v944, %v943
        %vm953 = vcmask 523264
        %v955 = vsel %vm953, %v916, 0
        %957 = vmatprep.subr.bf16.mxu0 0
        %958 = vmatpush1.bf16.msra.mxu0 %v945
        %959 = vmatprep.subr.bf16.mxu0 0
        %960 = vmatpush1.bf16.msra.mxu0 %v946
        %961 = vmatprep.subr.bf16.mxu0 0
        %962 = vmatpush1.bf16.msra.mxu0 %v947
        %963 = vmatprep.subr.bf16.mxu0 0
        %964 = vmatpush1.bf16.msra.mxu0 %v948
        %965 = vmatprep.subr.bf16.mxu0 0
        %966 = vmatpush1.bf16.msra.mxu0 0
        %967 = vmatprep.subr.bf16.mxu0 0
        %968 = vmatpush1.bf16.msra.mxu0 0
        %969 = vmatprep.subr.bf16.mxu0 0
        %970 = vmatpush1.bf16.msra.mxu0 0
        %971 = vmatprep.subr.bf16.mxu0 0
        %972 = vmatpush1.bf16.msra.mxu0 0
        %973 = vmatprep.subr.bf16.mxu0 0
        %974 = vmatpush1.bf16.msra.mxu0 0
        %975 = vmatprep.subr.bf16.mxu0 0
        %976 = vmatpush1.bf16.msra.mxu0 0
        %977 = vmatprep.subr.bf16.mxu0 0
        %978 = vmatpush1.bf16.msra.mxu0 0
        %979 = vmatprep.subr.bf16.mxu0 0
        %980 = vmatpush1.bf16.msra.mxu0 0
        %981 = vmatprep.subr.bf16.mxu0 0
        %982 = vmatpush1.bf16.msra.mxu0 0
        %983 = vmatprep.subr.bf16.mxu0 0
        %984 = vmatpush1.bf16.msra.mxu0 0
        %985 = vmatprep.subr.bf16.mxu0 0
        %986 = vmatpush1.bf16.msra.mxu0 0
        %987 = vmatprep.subr.bf16.mxu0 0
        %988 = vmatpush1.bf16.msra.mxu0 0
        %989 = vmatprep.mubr.bf16.mxu0 0
        %990 = vmatmul.mubr.bf16.gmra.mrb[0].mxu0 %v955
        %v991 = vpop.f32.mrb[0].mxu0
        %v992 = vadd.f32 %v928, %v991
        %v993 = vpop.f32.mrb[0].mxu0
        %v994 = vpop.f32.mrb[0].mxu0
        %v995 = vpop.f32.mrb[0].mxu0
        %996 = vdwg.mxu0
        %v997 = vadd.f32 %v992, %v347
        %v998 = vsel %vm385, %v997, 0.0
        %999 = vadd.xlane.f32.xlu0 %v998
        %v1000 = vpop.xlane.xlu0 %999
        %v1001 = vrcp.pop 32.0
        %v1002 = vmul.f32 %v1000, %v1001
        %v1003 = vsub.f32 %v997, %v1002
        %v1004 = vmul.f32 %v1003, %v1003
        %v1005 = vsel %vm385, %v1004, 0.0
        %1006 = vadd.xlane.f32.xlu0 %v1005
        %v1007 = vpop.xlane.xlu0 %1006
        %v1008 = vmul.f32 %v1007, %v1001
        %v1009 = vadd.f32 %v1008, 1e-05
        %v1010 = vrsqrt.pop %v1009
        %v1011 = vmul.f32 %v1003, %v1010
        %v1012 = vlaneseq
        %v1013 = vshrl.u32 %v1012, 7
        %v1014 = vsub.s32 1, %v1013
        %v1015 = vrot.slane %v915, %v1014
        %v1016 = vmul.f32 %v1011, %v1015
        %v1017 = vlaneseq
        %v1018 = vshrl.u32 %v1017, 7
        %v1019 = vsub.s32 2, %v1018
        %v1020 = vrot.slane %v915, %v1019
        %v1021 = vadd.f32 %v1016, %v1020
        %v1022 = vpack.c.bf16 %v1021, %v1021
        %v1023 = vld [vmem:[%s5] sm:$0xf]
        %v1024 = vld [vmem:[%s5 + $0x4] sm:$0xf]
        %v1025 = vld [vmem:[%s5 + $0x8] sm:$0xf]
        %v1026 = vld [vmem:[%s5 + $0xc] sm:$0xf]
        %v1027 = vld [vmem:[%s6] sm:$0x1]
        %v1029 = vlaneseq
        %v1030 = vshrl.u32 %v1029, 7
        %v1031 = vsub.s32 0, %v1030
        %v1032 = vrot.slane %v1027, %v1031
        %v1038 = vunpack.c.l.b16 %v1023
        %v1039 = vunpack.c.l.b16 %v1024
        %v1040 = vunpack.c.l.b16 %v1025
        %v1041 = vunpack.c.l.b16 %v1026
        %v1042 = vpack.c.b16 %v1039, %v1038
        %v1043 = vpack.c.b16 %v1041, %v1040
        %v1047 = vsel %vm385, %v1022, 0
        %1049 = vmatprep.subr.bf16.mxu0 0
        %1050 = vmatpush1.bf16.msra.mxu0 %v1042
        %1051 = vmatprep.subr.bf16.mxu0 0
        %1052 = vmatpush1.bf16.msra.mxu0 %v1043
        %1053 = vmatprep.subr.bf16.mxu0 0
        %1054 = vmatpush1.bf16.msra.mxu0 0
        %1055 = vmatprep.subr.bf16.mxu0 0
        %1056 = vmatpush1.bf16.msra.mxu0 0
        %1057 = vmatprep.subr.bf16.mxu0 0
        %1058 = vmatpush1.bf16.msra.mxu0 0
        %1059 = vmatprep.subr.bf16.mxu0 0
        %1060 = vmatpush1.bf16.msra.mxu0 0
        %1061 = vmatprep.subr.bf16.mxu0 0
        %1062 = vmatpush1.bf16.msra.mxu0 0
        %1063 = vmatprep.subr.bf16.mxu0 0
        %1064 = vmatpush1.bf16.msra.mxu0 0
        %1065 = vmatprep.subr.bf16.mxu0 0
        %1066 = vmatpush1.bf16.msra.mxu0 0
        %1067 = vmatprep.subr.bf16.mxu0 0
        %1068 = vmatpush1.bf16.msra.mxu0 0
        %1069 = vmatprep.subr.bf16.mxu0 0
        %1070 = vmatpush1.bf16.msra.mxu0 0
        %1071 = vmatprep.subr.bf16.mxu0 0
        %1072 = vmatpush1.bf16.msra.mxu0 0
        %1073 = vmatprep.subr.bf16.mxu0 0
        %1074 = vmatpush1.bf16.msra.mxu0 0
        %1075 = vmatprep.subr.bf16.mxu0 0
        %1076 = vmatpush1.bf16.msra.mxu0 0
        %1077 = vmatprep.subr.bf16.mxu0 0
        %1078 = vmatpush1.bf16.msra.mxu0 0
        %1079 = vmatprep.subr.bf16.mxu0 0
        %1080 = vmatpush1.bf16.msra.mxu0 0
        %1081 = vmatprep.mubr.bf16.mxu0 0
        %1082 = vmatmul.mubr.bf16.gmra.mrb[0].mxu0 %v1047
        %v1083 = vpop.f32.mrb[0].mxu0
        %v1084 = vadd.f32 %v1032, %v1083
        %v1085 = vpop.f32.mrb[0].mxu0
        %v1086 = vpop.f32.mrb[0].mxu0
        %v1087 = vpop.f32.mrb[0].mxu0
        %1088 = vdwg.mxu0
        %v1089 = vmax.f32 %v1084, 0.0
        %v1090 = vpack.c.bf16 %v1089, %v1089
        %v1091 = vld [vmem:[%s7] sm:$0xf]
        %v1092 = vld [vmem:[%s7 + $0x4] sm:$0xf]
        %v1093 = vld [vmem:[%s7 + $0x8] sm:$0xf]
        %v1094 = vld [vmem:[%s7 + $0xc] sm:$0xf]
        %v1095 = vld [vmem:[%s7 + $0x10] sm:$0xf]
        %v1096 = vld [vmem:[%s7 + $0x14] sm:$0xf]
        %v1097 = vld [vmem:[%s7 + $0x18] sm:$0xf]
        %v1098 = vld [vmem:[%s7 + $0x1c] sm:$0xf]
        %v1099 = vlaneseq
        %v1100 = vshrl.u32 %v1099, 7
        %v1101 = vsub.s32 3, %v1100
        %v1102 = vrot.slane %v915, %v1101
        %v1111 = vunpack.c.l.b16 %v1091
        %v1112 = vunpack.c.l.b16 %v1092
        %v1113 = vunpack.c.l.b16 %v1093
        %v1114 = vunpack.c.l.b16 %v1094
        %v1115 = vunpack.c.l.b16 %v1095
        %v1116 = vunpack.c.l.b16 %v1096
        %v1117 = vunpack.c.l.b16 %v1097
        %v1118 = vunpack.c.l.b16 %v1098
        %v1119 = vpack.c.b16 %v1112, %v1111
        %v1120 = vpack.c.b16 %v1114, %v1113
        %v1121 = vpack.c.b16 %v1116, %v1115
        %v1122 = vpack.c.b16 %v1118, %v1117
        %v1128 = vsel %vm953, %v1090, 0
        %1130 = vmatprep.subr.bf16.mxu0 0
        %1131 = vmatpush1.bf16.msra.mxu0 %v1119
        %1132 = vmatprep.subr.bf16.mxu0 0
        %1133 = vmatpush1.bf16.msra.mxu0 %v1120
        %1134 = vmatprep.subr.bf16.mxu0 0
        %1135 = vmatpush1.bf16.msra.mxu0 %v1121
        %1136 = vmatprep.subr.bf16.mxu0 0
        %1137 = vmatpush1.bf16.msra.mxu0 %v1122
        %1138 = vmatprep.subr.bf16.mxu0 0
        %1139 = vmatpush1.bf16.msra.mxu0 0
        %1140 = vmatprep.subr.bf16.mxu0 0
        %1141 = vmatpush1.bf16.msra.mxu0 0
        %1142 = vmatprep.subr.bf16.mxu0 0
        %1143 = vmatpush1.bf16.msra.mxu0 0
        %1144 = vmatprep.subr.bf16.mxu0 0
        %1145 = vmatpush1.bf16.msra.mxu0 0
        %1146 = vmatprep.subr.bf16.mxu0 0
        %1147 = vmatpush1.bf16.msra.mxu0 0
        %1148 = vmatprep.subr.bf16.mxu0 0
        %1149 = vmatpush1.bf16.msra.mxu0 0
        %1150 = vmatprep.subr.bf16.mxu0 0
        %1151 = vmatpush1.bf16.msra.mxu0 0
        %1152 = vmatprep.subr.bf16.mxu0 0
        %1153 = vmatpush1.bf16.msra.mxu0 0
        %1154 = vmatprep.subr.bf16.mxu0 0
        %1155 = vmatpush1.bf16.msra.mxu0 0
        %1156 = vmatprep.subr.bf16.mxu0 0
        %1157 = vmatpush1.bf16.msra.mxu0 0
        %1158 = vmatprep.subr.bf16.mxu0 0
        %1159 = vmatpush1.bf16.msra.mxu0 0
        %1160 = vmatprep.subr.bf16.mxu0 0
        %1161 = vmatpush1.bf16.msra.mxu0 0
        %1162 = vmatprep.mubr.bf16.mxu0 0
        %1163 = vmatmul.mubr.bf16.gmra.mrb[0].mxu0 %v1128
        %v1164 = vpop.f32.mrb[0].mxu0
        %v1165 = vadd.f32 %v1102, %v1164
        %v1166 = vpop.f32.mrb[0].mxu0
        %v1167 = vpop.f32.mrb[0].mxu0
        %v1168 = vpop.f32.mrb[0].mxu0
        %1169 = vdwg.mxu0
        %v1170 = vadd.f32 %v1165, %v1021
        %v1171 = vsel %vm385, %v1170, 0.0
        %1172 = vadd.xlane.f32.xlu0 %v1171
        %v1173 = vpop.xlane.xlu0 %1172
        %v1174 = vmul.f32 %v1173, %v1001
        %v1175 = vsub.f32 %v1170, %v1174
        %v1176 = vmul.f32 %v1175, %v1175
        %v1177 = vsel %vm385, %v1176, 0.0
        %1178 = vadd.xlane.f32.xlu0 %v1177
        %v1179 = vpop.xlane.xlu0 %1178
        %v1180 = vmul.f32 %v1179, %v1001
        %v1181 = vadd.f32 %v1180, 1e-05
        %v1182 = vrsqrt.pop %v1181
        %v1183 = vmul.f32 %v1175, %v1182
        %v1184 = vlaneseq
        %v1185 = vshrl.u32 %v1184, 7
        %v1186 = vsub.s32 4, %v1185
        %v1187 = vrot.slane %v915, %v1186
        %v1188 = vmul.f32 %v1183, %v1187
        %v1189 = vlaneseq
        %v1190 = vshrl.u32 %v1189, 7
        %v1191 = vsub.s32 5, %v1190
        %v1192 = vrot.slane %v915, %v1191
        %v1193 = vadd.f32 %v1188, %v1192
        %1194 = vst.msk [vmem:[%s334] sm:$0xff] %vm385, %v1193
        %s1195 = sand.u32 %s215, 1
        %s1196 = scalar_lea.sflag [#allocation5], %s1195
        %s1197 = sand.u32 %s215, 1
        %s1198 = smul.addr %s1197, 8
        %s1199 = scalar_lea.vmem [#allocation4], %s1198
        %s1200 = sand.u32 %s241, 1
        %s1201 = scalar_lea.sflag [#allocation7], %s1200
        %s1202 = sand.u32 %s241, 1
        %s1203 = smul.addr %s1202, 32
        %s1204 = scalar_lea.vmem [#allocation6], %s1203
        // Predicated region
        $region53: #{tpu_custom_call.1} parent=51 // pred_check
          %p1205 = pneg %p225
        $region54: #{tpu_custom_call.1} parent=51 // pred_check_branch
          %1207 = sbr.rel (%p1205) target = $region56
        $region55: #{tpu_custom_call.1} parent=51 // pred_region
          %s1209 = ssub.s32 128, 128
          %1210 = vsyncadd %s1196, %s1209
          %s1211 = smul.addr %s34, 128
          %s1212 = scalar_lea.hbm %s9, %s1211
          %s1214 = sshll.u32 %s1199, 4
          %s1215 = int_to_ptr.vmem [resolvable:$true] %s1214
          %1217 = dma.vmem_to_hbm [thread:$0]  %s1215, 128, %s1212, %s1196
        $region56: #{tpu_custom_call.1} parent=51 // pred_fallthru
          _
        // Predicated region
        $region57: #{tpu_custom_call.1} parent=51 // pred_check
          %p1218 = pneg %p251
        $region58: #{tpu_custom_call.1} parent=51 // pred_check_branch
          %1220 = sbr.rel (%p1218) target = $region60
        $region59: #{tpu_custom_call.1} parent=51 // pred_region
          %s1222 = ssub.s32 512, 512
          %1223 = vsyncadd %s1201, %s1222
          %s1224 = smul.addr %s34, 4
          %s1225 = smul.addr %s1224, 128
          %s1226 = scalar_lea.hbm %s10, %s1225
          %s1227 = sshll.u32 %s1204, 4
          %s1228 = int_to_ptr.vmem [resolvable:$true] %s1227
          %1233 = dma.vmem_to_hbm [thread:$0]  %s1228, 512, %s1226, %s1201, 128, 128, 8
        $region60: #{tpu_custom_call.1} parent=51 // pred_fallthru
          _
      $region52: #{tpu_custom_call.1} parent=5 // pred_fallthru
        _
      %p1234 = scmp.le.s32.totalorder 2, %s29
      // Predicated region
      $region61: #{tpu_custom_call.1} parent=5 // pred_check
        %p1235 = pneg %p1234
      $region62: #{tpu_custom_call.1} parent=5 // pred_check_branch
        %1237 = sbr.rel (%p1235) target = $region64
      $region63: #{tpu_custom_call.1} parent=5 // pred_region
        %s1238 = ssub.s32 %s29, 2
        // Predicated region
        $region65: #{tpu_custom_call.1} parent=63 // pred_check
          %p1239 = pneg %p231
        $region66: #{tpu_custom_call.1} parent=63 // pred_check_branch
          %1241 = sbr.rel (%p1239) target = $region68
        $region67: #{tpu_custom_call.1} parent=63 // pred_region
          %s1242 = sand.u32 %s216, 1
          %s1243 = scalar_lea.sflag [#allocation5], %s1242
          %s1244 = sand.u32 %s216, 1
          %s1245 = smul.addr %s1244, 8
          %s1246 = scalar_lea.vmem [#allocation4], %s1245
          %1247 = dma.done %s1243, 128
        $region68: #{tpu_custom_call.1} parent=63 // pred_fallthru
          _
        // Predicated region
        $region69: #{tpu_custom_call.1} parent=63 // pred_check
          %p1248 = pneg %p257
        $region70: #{tpu_custom_call.1} parent=63 // pred_check_branch
          %1250 = sbr.rel (%p1248) target = $region72
        $region71: #{tpu_custom_call.1} parent=63 // pred_region
          %s1251 = sand.u32 %s242, 1
          %s1252 = scalar_lea.sflag [#allocation7], %s1251
          %s1253 = sand.u32 %s242, 1
          %s1254 = smul.addr %s1253, 32
          %s1255 = scalar_lea.vmem [#allocation6], %s1254
          %1256 = dma.done %s1252, 512
        $region72: #{tpu_custom_call.1} parent=63 // pred_fallthru
          _
      $region64: #{tpu_custom_call.1} parent=5 // pred_fallthru
        _
    $region6: #{tpu_custom_call.1} parent=1 // loop_footer
      %s33 = sadd.s32 1, %s29
    $region7: #{tpu_custom_call.1} parent=1 // loop_footer_branch
      %28 = sbr.rel target = $region3
    $region8: #{tpu_custom_call.1} parent=1 // loop_exit
      _
    %1257 = vsyncpa [#allocation5], 1
    %s1258 = scalar_lea.sflag [#allocation5], 1
    %1259 = vsyncpa %s1258, 1
    %1260 = vsyncpa [#allocation7], 1
    %s1261 = scalar_lea.sflag [#allocation7], 1
    %1262 = vsyncpa %s1261, 1

</llo_original>
